<compile_context>
chip_gen: v5e
topology: v5e:2x2
jax: 0.10.0
libtpu: 0.0.40
codegen_flags: <defaults>
</compile_context>

<pallas_src>
import math

import jax
import jax.numpy as jnp
import numpy as np
from jax.experimental import pallas as pl
from jax.experimental.pallas import tpu as pltpu

# ----------------------------- small BERT config -----------------------------
VOCAB = 128
HIDDEN = 32
N_LAYERS = 2
N_HEADS = 2
HEAD_DIM = HIDDEN // N_HEADS
INTERMEDIATE = 64
MAX_POS = 64
SEQ_LEN = 8
LN_EPS = 1e-12

# ---- packed-slab row offsets (all block starts 8-aligned) -------------------
# Slab 1: embeddings + MLM head, shape (EH_ROWS, VOCAB=128 lanes)
R_WEMB = 0                      # (VOCAB, HIDDEN)
R_POS = 128                     # (SEQ_LEN, HIDDEN)  -- token_type_0 folded in
R_EMB_LN_G = 136
R_EMB_LN_B = 137
R_TR_W = 144                    # (HIDDEN, HIDDEN)
R_TR_B = 176
R_TR_LN_G = 184
R_TR_LN_B = 185
R_DEC_W = 192                   # (HIDDEN, VOCAB)
R_DEC_B = 224
EH_ROWS = 232

# Slab 2: per-layer weights, shape (N_LAYERS, L_ROWS, 3*HIDDEN=96 lanes)
R_QKV_W = 0                     # (HIDDEN, 3*HIDDEN) -- scale folded into Q cols
R_QKV_B = 32
R_O_W = 40                      # (HIDDEN, HIDDEN)
R_O_B = 72
R_LN1_G = 80
R_LN1_B = 81
R_I_W = 88                      # (HIDDEN, INTERMEDIATE)
R_I_B = 120
R_F_W = 128                     # (INTERMEDIATE, HIDDEN)
R_F_B = 192
R_LN2_G = 200
R_LN2_B = 201
L_ROWS = 208


# TODO(synk): HF BERT uses exact erf-GELU; the tanh approximation is used here
#             (erf has no guaranteed Mosaic lowering).
def _gelu(x):
    return 0.5 * x * (1.0 + jnp.tanh(0.7978845608028654 * (x + 0.044715 * x * x * x)))


def _layernorm(x, g, b):
    mu = jnp.mean(x, axis=-1, keepdims=True)
    d = x - mu
    var = jnp.mean(d * d, axis=-1, keepdims=True)
    return d * jax.lax.rsqrt(var + LN_EPS) * g + b


# ------------------------------- fused kernel --------------------------------
def _fused_bert_mlm_kernel(ids_ref, eh_ref, lay_ref, probs_ref, pred_ref):
    H, V, D, S = HIDDEN, VOCAB, HEAD_DIM, SEQ_LEN
    N = ids_ref.shape[0]              # B*S (static)
    Bseq = N // S

    # ---- embeddings: word gather as one-hot matmul (runs on the MXU) ----
    ids = ids_ref[...]                                          # (N, 1) int32
    vocab_iota = jax.lax.broadcasted_iota(jnp.int32, (N, V), 1)
    one_hot = (vocab_iota == ids).astype(jnp.float32)           # (N, V)
    word_emb = eh_ref[R_WEMB:R_WEMB + V, 0:H]                   # (V, H)
    h = jnp.dot(one_hot, word_emb, preferred_element_type=jnp.float32)

    pos = eh_ref[R_POS:R_POS + S, 0:H]                          # pos + tok_type0 (folded)
    h = h + jnp.concatenate([pos] * Bseq, axis=0)               # broadcast per sequence
    h = _layernorm(h,
                   eh_ref[R_EMB_LN_G:R_EMB_LN_G + 1, 0:H],
                   eh_ref[R_EMB_LN_B:R_EMB_LN_B + 1, 0:H])

    # ---- transformer layers (statically unrolled, weights stay in VMEM) ----
    for l in range(N_LAYERS):
        qkv_w = lay_ref[l, R_QKV_W:R_QKV_W + H, :]              # (H, 3H), Q pre-scaled
        qkv_b = lay_ref[l, R_QKV_B:R_QKV_B + 1, :]              # (1, 3H)
        o_w = lay_ref[l, R_O_W:R_O_W + H, 0:H]
        o_b = lay_ref[l, R_O_B:R_O_B + 1, 0:H]
        ln1_g = lay_ref[l, R_LN1_G:R_LN1_G + 1, 0:H]
        ln1_b = lay_ref[l, R_LN1_B:R_LN1_B + 1, 0:H]
        i_w = lay_ref[l, R_I_W:R_I_W + H, 0:INTERMEDIATE]
        i_b = lay_ref[l, R_I_B:R_I_B + 1, 0:INTERMEDIATE]
        f_w = lay_ref[l, R_F_W:R_F_W + INTERMEDIATE, 0:H]
        f_b = lay_ref[l, R_F_B:R_F_B + 1, 0:H]
        ln2_g = lay_ref[l, R_LN2_G:R_LN2_G + 1, 0:H]
        ln2_b = lay_ref[l, R_LN2_B:R_LN2_B + 1, 0:H]

        # fused QKV projection: one (N,H) @ (H,3H) matmul
        qkv = jnp.dot(h, qkv_w, preferred_element_type=jnp.float32) + qkv_b

        # per-sequence, per-head attention (static loops; values stay in vregs)
        ctx_rows = []
        for b in range(Bseq):
            qkv_b_seq = qkv[b * S:(b + 1) * S, :]               # (S, 3H)
            heads = []
            for hh in range(N_HEADS):
                qh = qkv_b_seq[:, hh * D:(hh + 1) * D]          # already scaled
                kh = qkv_b_seq[:, H + hh * D:H + (hh + 1) * D]
                vh = qkv_b_seq[:, 2 * H + hh * D:2 * H + (hh + 1) * D]
                s = jax.lax.dot_general(
                    qh, kh, (((1,), (1,)), ((), ())),
                    preferred_element_type=jnp.float32)          # (S, S)
                s = s - jnp.max(s, axis=-1, keepdims=True)
                p = jnp.exp(s)
                p = p / jnp.sum(p, axis=-1, keepdims=True)        # exact (torch semantics)
                heads.append(jnp.dot(p, vh, preferred_element_type=jnp.float32))
            ctx_rows.append(jnp.concatenate(heads, axis=-1))      # (S, H)
        ctx = jnp.concatenate(ctx_rows, axis=0)                   # (N, H)

        attn_out = jnp.dot(ctx, o_w, preferred_element_type=jnp.float32) + o_b
        h = _layernorm(attn_out + h, ln1_g, ln1_b)

        inter = _gelu(jnp.dot(h, i_w, preferred_element_type=jnp.float32) + i_b)
        ffn = jnp.dot(inter, f_w, preferred_element_type=jnp.float32) + f_b
        h = _layernorm(ffn + h, ln2_g, ln2_b)

    # ---- MLM head + softmax + argmax (fused; logits never leave VMEM) ----
    tr_w = eh_ref[R_TR_W:R_TR_W + H, 0:H]
    tr_b = eh_ref[R_TR_B:R_TR_B + 1, 0:H]
    t = _gelu(jnp.dot(h, tr_w, preferred_element_type=jnp.float32) + tr_b)
    t = _layernorm(t,
                   eh_ref[R_TR_LN_G:R_TR_LN_G + 1, 0:H],
                   eh_ref[R_TR_LN_B:R_TR_LN_B + 1, 0:H])
    dec_w = eh_ref[R_DEC_W:R_DEC_W + H, :]                       # (H, V)
    dec_b = eh_ref[R_DEC_B:R_DEC_B + 1, :]
    logits = jnp.dot(t, dec_w, preferred_element_type=jnp.float32) + dec_b

    m = jnp.max(logits, axis=-1, keepdims=True)
    e = jnp.exp(logits - m)
    probs_ref[...] = e / jnp.sum(e, axis=-1, keepdims=True)      # exact softmax
    # TODO(synk): tie-break returns lowest maximal index; torch.max tie-break
    #             is unspecified (benign with f32 logits).
    cand = jnp.where(logits == m, vocab_iota, jnp.int32(2**31 - 1))
    pred_ref[...] = jnp.min(cand, axis=-1, keepdims=True)


# -------------------------------- wrapper -------------------------------------
def mlm_cls_forward(input_ids, p):
    """Returns (pred_sent_tokenids, logits_all-softmaxed) like the PyTorch module."""
    B, S = input_ids.shape
    assert S == SEQ_LEN
    N = B * S
    ids = input_ids.reshape(N, 1).astype(jnp.int32)

    probs, pred = pl.pallas_call(
        _fused_bert_mlm_kernel,
        out_shape=(
            jax.ShapeDtypeStruct((N, VOCAB), jnp.float32),
            jax.ShapeDtypeStruct((N, 1), jnp.int32),
        ),
        grid=(1,),
        in_specs=[
            pl.BlockSpec((N, 1), lambda i: (0, 0)),                         # input ids
            pl.BlockSpec((EH_ROWS, VOCAB), lambda i: (0, 0)),               # emb + head slab
            pl.BlockSpec((N_LAYERS, L_ROWS, 3 * HIDDEN), lambda i: (0, 0, 0)),  # layer slab
        ],
        out_specs=(
            pl.BlockSpec((N, VOCAB), lambda i: (0, 0)),                     # lane-dense probs
            pl.BlockSpec((N, 1), lambda i: (0, 0)),
        ),
        compiler_params=pltpu.CompilerParams(
            dimension_semantics=("arbitrary",),
            vmem_limit_bytes=4 * 1024 * 1024,        # working set << 1 MiB
        ),
    )(ids, p["emb_head"], p["layers"])

    return pred.reshape(B, S), probs.reshape(B, S, VOCAB)


# ------------------------------ parameter setup -------------------------------
def init_params(key):
    """Builds the two packed f32 parameter slabs (scale and token-type-0 folded in)."""
    keys = iter(jax.random.split(key, 32))

    def nrm(shape):
        return jax.random.normal(next(keys), shape, jnp.float32) * 0.02

    def put(slab, row, a):
        return slab.at[row:row + a.shape[0], :a.shape[1]].set(a)

    scale = 1.0 / math.sqrt(HEAD_DIM)
    ones_h = jnp.ones((1, HIDDEN), jnp.float32)

    # ---- slab 1: embeddings + MLM head ----
    word_emb = nrm((VOCAB, HIDDEN))
    pos_emb = nrm((MAX_POS, HIDDEN))
    tok_type_emb = nrm((2, HIDDEN))
    # token_type_ids are all zeros in the reference forward -> fold row 0 into pos.
    pos_fold = pos_emb[:SEQ_LEN] + tok_type_emb[0:1]
    tr_w = nrm((HIDDEN, HIDDEN))
    dec_w = nrm((HIDDEN, VOCAB))

    eh = jnp.zeros((EH_ROWS, VOCAB), jnp.float32)
    eh = put(eh, R_WEMB, word_emb)
    eh = put(eh, R_POS, pos_fold)
    eh = put(eh, R_EMB_LN_G, ones_h)      # LN betas / biases stay zero rows
    eh = put(eh, R_TR_W, tr_w)
    eh = put(eh, R_TR_LN_G, ones_h)
    eh = put(eh, R_DEC_W, dec_w)

    # ---- slab 2: per-layer transformer weights ----
    layer_slabs = []
    for _ in range(N_LAYERS):
        qw = nrm((HIDDEN, HIDDEN)) * scale            # fold 1/sqrt(head_dim) into Q
        kw = nrm((HIDDEN, HIDDEN))
        vw = nrm((HIDDEN, HIDDEN))
        qkv_w = jnp.concatenate([qw, kw, vw], axis=1)  # fused (H, 3H)
        o_w = nrm((HIDDEN, HIDDEN))
        i_w = nrm((HIDDEN, INTERMEDIATE))
        f_w = nrm((INTERMEDIATE, HIDDEN))

        sl = jnp.zeros((L_ROWS, 3 * HIDDEN), jnp.float32)
        sl = put(sl, R_QKV_W, qkv_w)                   # biases stay zero rows
        sl = put(sl, R_O_W, o_w)
        sl = put(sl, R_LN1_G, ones_h)
        sl = put(sl, R_I_W, i_w)
        sl = put(sl, R_F_W, f_w)
        sl = put(sl, R_LN2_G, ones_h)
        layer_slabs.append(sl)

    return {"emb_head": eh, "layers": jnp.stack(layer_slabs)}


# ------------------------------------ main --------------------------------------
if __name__ == "__main__":
    key = jax.random.PRNGKey(0)
    pkey, ikey = jax.random.split(key)
    params = init_params(pkey)

    B, S = 2, SEQ_LEN
    input_ids = jax.random.randint(ikey, (B, S), 0, VOCAB, dtype=jnp.int32)

    fwd = jax.jit(mlm_cls_forward)
    pred_ids, probs = fwd(input_ids, params)
    jax.block_until_ready(probs)
    jax.block_until_ready(pred_ids)

    pred_sent_tokenids = np.asarray(pred_ids).tolist()            # .cpu().tolist() analogue

    assert probs.shape == (B, S, VOCAB)
    assert len(pred_sent_tokenids) == B and len(pred_sent_tokenids[0]) == S
    # softmax rows must sum to 1
    assert np.allclose(np.asarray(probs).sum(-1), 1.0, atol=1e-4)
    # predictions must be valid vocab ids and consistent with probs argmax
    assert np.all((np.asarray(pred_ids) >= 0) & (np.asarray(pred_ids) < VOCAB))
    assert np.array_equal(np.asarray(pred_ids), np.asarray(probs).argmax(-1))

    print("KERNEL_OK")
</pallas_src>

<mosaic_0001>
module attributes {stable_mosaic.version = 11 : i64} {
  func.func @_fused_bert_mlm_kernel(%arg0: i32, %arg1: memref<16x1xi32, #tpu.memory_space<vmem>>, %arg2: memref<232x128xf32, #tpu.memory_space<vmem>>, %arg3: memref<2x208x96xf32, #tpu.memory_space<vmem>>, %arg4: memref<16x128xf32, #tpu.memory_space<vmem>>, %arg5: memref<16x1xi32, #tpu.memory_space<vmem>>) attributes {dimension_semantics = [#tpu.dimension_semantics<arbitrary>], iteration_bounds = array<i64: 1>, scalar_prefetch = 0 : i64, scratch_operands = 0 : i64, tpu.core_type = #tpu.core_type<tc>, window_params = [{pipeline_mode = #tpu.pipeline_mode<synchronous>, transform_indices = @transform_0, window_bounds = array<i64: 16, 1>}, {pipeline_mode = #tpu.pipeline_mode<synchronous>, transform_indices = @transform_1, window_bounds = array<i64: 232, 128>}, {pipeline_mode = #tpu.pipeline_mode<synchronous>, transform_indices = @transform_2, window_bounds = array<i64: 2, 208, 96>}, {pipeline_mode = #tpu.pipeline_mode<synchronous>, transform_indices = @transform_3, window_bounds = array<i64: 16, 128>}, {pipeline_mode = #tpu.pipeline_mode<synchronous>, transform_indices = @transform_4, window_bounds = array<i64: 16, 1>}]} {
    %c0 = arith.constant 0 : index
    %c0_0 = arith.constant 0 : index
    %0 = vector.load %arg1[%c0, %c0_0] : memref<16x1xi32, #tpu.memory_space<vmem>>, vector<16x1xi32>
    %1 = tpu.iota {dimensions = array<i32: 1>} : vector<16x128xi32>
    %2 = vector.broadcast %0 : vector<16x1xi32> to vector<16x128xi32>
    %3 = arith.cmpi eq, %1, %2 : vector<16x128xi32>
    %4 = arith.extui %3 : vector<16x128xi1> to vector<16x128xi32>
    %5 = arith.sitofp %4 : vector<16x128xi32> to vector<16x128xf32>
    %c0_1 = arith.constant 0 : index
    %c0_2 = arith.constant 0 : index
    %6 = vector.load %arg2[%c0_1, %c0_2] : memref<232x128xf32, #tpu.memory_space<vmem>>, vector<128x32xf32>
    %cst = arith.constant dense<0.000000e+00> : vector<16x32xf32>
    %7 = tpu.matmul %5, %6, %cst {dimension_numbers = #tpu.dot_dimension_numbers<[1], [0], [0], [1], [0, 0, 1, 1], [], []>} : vector<16x128xf32>, vector<128x32xf32>, vector<16x32xf32> -> vector<16x32xf32>
    %c128 = arith.constant 128 : index
    %c0_3 = arith.constant 0 : index
    %8 = vector.load %arg2[%c128, %c0_3] : memref<232x128xf32, #tpu.memory_space<vmem>>, vector<8x32xf32>
    %9 = tpu.concatenate %8, %8 in 0 : vector<8x32xf32>, vector<8x32xf32> -> vector<16x32xf32>
    %10 = arith.addf %7, %9 : vector<16x32xf32>
    %c136 = arith.constant 136 : index
    %c0_4 = arith.constant 0 : index
    %11 = vector.load %arg2[%c136, %c0_4] : memref<232x128xf32, #tpu.memory_space<vmem>>, vector<1x32xf32>
    %c137 = arith.constant 137 : index
    %c0_5 = arith.constant 0 : index
    %12 = vector.load %arg2[%c137, %c0_5] : memref<232x128xf32, #tpu.memory_space<vmem>>, vector<1x32xf32>
    %cst_6 = arith.constant dense<0.000000e+00> : vector<16xf32>
    %13 = vector.multi_reduction <add>, %10, %cst_6 [1] : vector<16x32xf32> to vector<16xf32>
    %14 = vector.shape_cast %13 : vector<16xf32> to vector<16x1xf32>
    %cst_7 = arith.constant 3.200000e+01 : f32
    %15 = vector.broadcast %cst_7 : f32 to vector<16x1xf32>
    %16 = arith.divf %14, %15 : vector<16x1xf32>
    %17 = vector.broadcast %16 : vector<16x1xf32> to vector<16x32xf32>
    %18 = arith.subf %10, %17 : vector<16x32xf32>
    %19 = arith.mulf %18, %18 : vector<16x32xf32>
    %cst_8 = arith.constant dense<0.000000e+00> : vector<16xf32>
    %20 = vector.multi_reduction <add>, %19, %cst_8 [1] : vector<16x32xf32> to vector<16xf32>
    %21 = vector.shape_cast %20 : vector<16xf32> to vector<16x1xf32>
    %cst_9 = arith.constant 3.200000e+01 : f32
    %22 = vector.broadcast %cst_9 : f32 to vector<16x1xf32>
    %23 = arith.divf %21, %22 : vector<16x1xf32>
    %cst_10 = arith.constant 9.99999996E-13 : f32
    %24 = vector.broadcast %cst_10 : f32 to vector<16x1xf32>
    %25 = arith.addf %23, %24 : vector<16x1xf32>
    %26 = math.rsqrt %25 : vector<16x1xf32>
    %27 = vector.broadcast %26 : vector<16x1xf32> to vector<16x32xf32>
    %28 = arith.mulf %18, %27 : vector<16x32xf32>
    %29 = vector.broadcast %11 : vector<1x32xf32> to vector<16x32xf32>
    %30 = arith.mulf %28, %29 : vector<16x32xf32>
    %31 = vector.broadcast %12 : vector<1x32xf32> to vector<16x32xf32>
    %32 = arith.addf %30, %31 : vector<16x32xf32>
    %c0_11 = arith.constant 0 : index
    %c0_12 = arith.constant 0 : index
    %c0_13 = arith.constant 0 : index
    %33 = vector.load %arg3[%c0_11, %c0_12, %c0_13] : memref<2x208x96xf32, #tpu.memory_space<vmem>>, vector<1x32x96xf32>
    %34 = vector.shape_cast %33 : vector<1x32x96xf32> to vector<32x96xf32>
    %c0_14 = arith.constant 0 : index
    %c32 = arith.constant 32 : index
    %c0_15 = arith.constant 0 : index
    %35 = vector.load %arg3[%c0_14, %c32, %c0_15] : memref<2x208x96xf32, #tpu.memory_space<vmem>>, vector<1x1x96xf32>
    %36 = vector.shape_cast %35 : vector<1x1x96xf32> to vector<1x96xf32>
    %c0_16 = arith.constant 0 : index
    %c40 = arith.constant 40 : index
    %c0_17 = arith.constant 0 : index
    %37 = vector.load %arg3[%c0_16, %c40, %c0_17] : memref<2x208x96xf32, #tpu.memory_space<vmem>>, vector<1x32x32xf32>
    %38 = vector.shape_cast %37 : vector<1x32x32xf32> to vector<32x32xf32>
    %c0_18 = arith.constant 0 : index
    %c72 = arith.constant 72 : index
    %c0_19 = arith.constant 0 : index
    %39 = vector.load %arg3[%c0_18, %c72, %c0_19] : memref<2x208x96xf32, #tpu.memory_space<vmem>>, vector<1x1x32xf32>
    %40 = vector.shape_cast %39 : vector<1x1x32xf32> to vector<1x32xf32>
    %c0_20 = arith.constant 0 : index
    %c80 = arith.constant 80 : index
    %c0_21 = arith.constant 0 : index
    %41 = vector.load %arg3[%c0_20, %c80, %c0_21] : memref<2x208x96xf32, #tpu.memory_space<vmem>>, vector<1x1x32xf32>
    %42 = vector.shape_cast %41 : vector<1x1x32xf32> to vector<1x32xf32>
    %c0_22 = arith.constant 0 : index
    %c81 = arith.constant 81 : index
    %c0_23 = arith.constant 0 : index
    %43 = vector.load %arg3[%c0_22, %c81, %c0_23] : memref<2x208x96xf32, #tpu.memory_space<vmem>>, vector<1x1x32xf32>
    %44 = vector.shape_cast %43 : vector<1x1x32xf32> to vector<1x32xf32>
    %c0_24 = arith.constant 0 : index
    %c88 = arith.constant 88 : index
    %c0_25 = arith.constant 0 : index
    %45 = vector.load %arg3[%c0_24, %c88, %c0_25] : memref<2x208x96xf32, #tpu.memory_space<vmem>>, vector<1x32x64xf32>
    %46 = vector.shape_cast %45 : vector<1x32x64xf32> to vector<32x64xf32>
    %c0_26 = arith.constant 0 : index
    %c120 = arith.constant 120 : index
    %c0_27 = arith.constant 0 : index
    %47 = vector.load %arg3[%c0_26, %c120, %c0_27] : memref<2x208x96xf32, #tpu.memory_space<vmem>>, vector<1x1x64xf32>
    %48 = vector.shape_cast %47 : vector<1x1x64xf32> to vector<1x64xf32>
    %c0_28 = arith.constant 0 : index
    %c128_29 = arith.constant 128 : index
    %c0_30 = arith.constant 0 : index
    %49 = vector.load %arg3[%c0_28, %c128_29, %c0_30] : memref<2x208x96xf32, #tpu.memory_space<vmem>>, vector<1x64x32xf32>
    %50 = vector.shape_cast %49 : vector<1x64x32xf32> to vector<64x32xf32>
    %c0_31 = arith.constant 0 : index
    %c192 = arith.constant 192 : index
    %c0_32 = arith.constant 0 : index
    %51 = vector.load %arg3[%c0_31, %c192, %c0_32] : memref<2x208x96xf32, #tpu.memory_space<vmem>>, vector<1x1x32xf32>
    %52 = vector.shape_cast %51 : vector<1x1x32xf32> to vector<1x32xf32>
    %c0_33 = arith.constant 0 : index
    %c200 = arith.constant 200 : index
    %c0_34 = arith.constant 0 : index
    %53 = vector.load %arg3[%c0_33, %c200, %c0_34] : memref<2x208x96xf32, #tpu.memory_space<vmem>>, vector<1x1x32xf32>
    %54 = vector.shape_cast %53 : vector<1x1x32xf32> to vector<1x32xf32>
    %c0_35 = arith.constant 0 : index
    %c201 = arith.constant 201 : index
    %c0_36 = arith.constant 0 : index
    %55 = vector.load %arg3[%c0_35, %c201, %c0_36] : memref<2x208x96xf32, #tpu.memory_space<vmem>>, vector<1x1x32xf32>
    %56 = vector.shape_cast %55 : vector<1x1x32xf32> to vector<1x32xf32>
    %cst_37 = arith.constant dense<0.000000e+00> : vector<16x96xf32>
    %57 = tpu.matmul %32, %34, %cst_37 {dimension_numbers = #tpu.dot_dimension_numbers<[1], [0], [0], [1], [0, 0, 1, 1], [], []>} : vector<16x32xf32>, vector<32x96xf32>, vector<16x96xf32> -> vector<16x96xf32>
    %58 = vector.broadcast %36 : vector<1x96xf32> to vector<16x96xf32>
    %59 = arith.addf %57, %58 : vector<16x96xf32>
    %60 = vector.extract_strided_slice %59 {offsets = [0, 0], sizes = [8, 96], strides = [1, 1]} : vector<16x96xf32> to vector<8x96xf32>
    %61 = vector.extract_strided_slice %60 {offsets = [0, 0], sizes = [8, 16], strides = [1, 1]} : vector<8x96xf32> to vector<8x16xf32>
    %62 = vector.extract_strided_slice %60 {offsets = [0, 32], sizes = [8, 16], strides = [1, 1]} : vector<8x96xf32> to vector<8x16xf32>
    %63 = vector.extract_strided_slice %60 {offsets = [0, 64], sizes = [8, 16], strides = [1, 1]} : vector<8x96xf32> to vector<8x16xf32>
    %cst_38 = arith.constant dense<0.000000e+00> : vector<8x8xf32>
    %64 = tpu.matmul %61, %62, %cst_38 {dimension_numbers = #tpu.dot_dimension_numbers<[1], [1], [0], [0], [0, 0, 1, 0], [], []>} : vector<8x16xf32>, vector<8x16xf32>, vector<8x8xf32> -> vector<8x8xf32>
    %cst_39 = arith.constant dense<0xFF800000> : vector<8xf32>
    %65 = vector.multi_reduction <maximumf>, %64, %cst_39 [1] : vector<8x8xf32> to vector<8xf32>
    %66 = vector.shape_cast %65 : vector<8xf32> to vector<8x1xf32>
    %67 = vector.broadcast %66 : vector<8x1xf32> to vector<8x8xf32>
    %68 = arith.subf %64, %67 : vector<8x8xf32>
    %69 = math.exp %68 : vector<8x8xf32>
    %cst_40 = arith.constant dense<0.000000e+00> : vector<8xf32>
    %70 = vector.multi_reduction <add>, %69, %cst_40 [1] : vector<8x8xf32> to vector<8xf32>
    %71 = vector.shape_cast %70 : vector<8xf32> to vector<8x1xf32>
    %72 = vector.broadcast %71 : vector<8x1xf32> to vector<8x8xf32>
    %73 = arith.divf %69, %72 : vector<8x8xf32>
    %cst_41 = arith.constant dense<0.000000e+00> : vector<8x16xf32>
    %74 = tpu.matmul %73, %63, %cst_41 {dimension_numbers = #tpu.dot_dimension_numbers<[1], [0], [0], [1], [0, 0, 1, 1], [], []>} : vector<8x8xf32>, vector<8x16xf32>, vector<8x16xf32> -> vector<8x16xf32>
    %75 = vector.extract_strided_slice %60 {offsets = [0, 16], sizes = [8, 16], strides = [1, 1]} : vector<8x96xf32> to vector<8x16xf32>
    %76 = vector.extract_strided_slice %60 {offsets = [0, 48], sizes = [8, 16], strides = [1, 1]} : vector<8x96xf32> to vector<8x16xf32>
    %77 = vector.extract_strided_slice %60 {offsets = [0, 80], sizes = [8, 16], strides = [1, 1]} : vector<8x96xf32> to vector<8x16xf32>
    %cst_42 = arith.constant dense<0.000000e+00> : vector<8x8xf32>
    %78 = tpu.matmul %75, %76, %cst_42 {dimension_numbers = #tpu.dot_dimension_numbers<[1], [1], [0], [0], [0, 0, 1, 0], [], []>} : vector<8x16xf32>, vector<8x16xf32>, vector<8x8xf32> -> vector<8x8xf32>
    %cst_43 = arith.constant dense<0xFF800000> : vector<8xf32>
    %79 = vector.multi_reduction <maximumf>, %78, %cst_43 [1] : vector<8x8xf32> to vector<8xf32>
    %80 = vector.shape_cast %79 : vector<8xf32> to vector<8x1xf32>
    %81 = vector.broadcast %80 : vector<8x1xf32> to vector<8x8xf32>
    %82 = arith.subf %78, %81 : vector<8x8xf32>
    %83 = math.exp %82 : vector<8x8xf32>
    %cst_44 = arith.constant dense<0.000000e+00> : vector<8xf32>
    %84 = vector.multi_reduction <add>, %83, %cst_44 [1] : vector<8x8xf32> to vector<8xf32>
    %85 = vector.shape_cast %84 : vector<8xf32> to vector<8x1xf32>
    %86 = vector.broadcast %85 : vector<8x1xf32> to vector<8x8xf32>
    %87 = arith.divf %83, %86 : vector<8x8xf32>
    %cst_45 = arith.constant dense<0.000000e+00> : vector<8x16xf32>
    %88 = tpu.matmul %87, %77, %cst_45 {dimension_numbers = #tpu.dot_dimension_numbers<[1], [0], [0], [1], [0, 0, 1, 1], [], []>} : vector<8x8xf32>, vector<8x16xf32>, vector<8x16xf32> -> vector<8x16xf32>
    %89 = tpu.concatenate %74, %88 in 1 : vector<8x16xf32>, vector<8x16xf32> -> vector<8x32xf32>
    %90 = vector.extract_strided_slice %59 {offsets = [8, 0], sizes = [8, 96], strides = [1, 1]} : vector<16x96xf32> to vector<8x96xf32>
    %91 = vector.extract_strided_slice %90 {offsets = [0, 0], sizes = [8, 16], strides = [1, 1]} : vector<8x96xf32> to vector<8x16xf32>
    %92 = vector.extract_strided_slice %90 {offsets = [0, 32], sizes = [8, 16], strides = [1, 1]} : vector<8x96xf32> to vector<8x16xf32>
    %93 = vector.extract_strided_slice %90 {offsets = [0, 64], sizes = [8, 16], strides = [1, 1]} : vector<8x96xf32> to vector<8x16xf32>
    %cst_46 = arith.constant dense<0.000000e+00> : vector<8x8xf32>
    %94 = tpu.matmul %91, %92, %cst_46 {dimension_numbers = #tpu.dot_dimension_numbers<[1], [1], [0], [0], [0, 0, 1, 0], [], []>} : vector<8x16xf32>, vector<8x16xf32>, vector<8x8xf32> -> vector<8x8xf32>
    %cst_47 = arith.constant dense<0xFF800000> : vector<8xf32>
    %95 = vector.multi_reduction <maximumf>, %94, %cst_47 [1] : vector<8x8xf32> to vector<8xf32>
    %96 = vector.shape_cast %95 : vector<8xf32> to vector<8x1xf32>
    %97 = vector.broadcast %96 : vector<8x1xf32> to vector<8x8xf32>
    %98 = arith.subf %94, %97 : vector<8x8xf32>
    %99 = math.exp %98 : vector<8x8xf32>
    %cst_48 = arith.constant dense<0.000000e+00> : vector<8xf32>
    %100 = vector.multi_reduction <add>, %99, %cst_48 [1] : vector<8x8xf32> to vector<8xf32>
    %101 = vector.shape_cast %100 : vector<8xf32> to vector<8x1xf32>
    %102 = vector.broadcast %101 : vector<8x1xf32> to vector<8x8xf32>
    %103 = arith.divf %99, %102 : vector<8x8xf32>
    %cst_49 = arith.constant dense<0.000000e+00> : vector<8x16xf32>
    %104 = tpu.matmul %103, %93, %cst_49 {dimension_numbers = #tpu.dot_dimension_numbers<[1], [0], [0], [1], [0, 0, 1, 1], [], []>} : vector<8x8xf32>, vector<8x16xf32>, vector<8x16xf32> -> vector<8x16xf32>
    %105 = vector.extract_strided_slice %90 {offsets = [0, 16], sizes = [8, 16], strides = [1, 1]} : vector<8x96xf32> to vector<8x16xf32>
    %106 = vector.extract_strided_slice %90 {offsets = [0, 48], sizes = [8, 16], strides = [1, 1]} : vector<8x96xf32> to vector<8x16xf32>
    %107 = vector.extract_strided_slice %90 {offsets = [0, 80], sizes = [8, 16], strides = [1, 1]} : vector<8x96xf32> to vector<8x16xf32>
    %cst_50 = arith.constant dense<0.000000e+00> : vector<8x8xf32>
    %108 = tpu.matmul %105, %106, %cst_50 {dimension_numbers = #tpu.dot_dimension_numbers<[1], [1], [0], [0], [0, 0, 1, 0], [], []>} : vector<8x16xf32>, vector<8x16xf32>, vector<8x8xf32> -> vector<8x8xf32>
    %cst_51 = arith.constant dense<0xFF800000> : vector<8xf32>
    %109 = vector.multi_reduction <maximumf>, %108, %cst_51 [1] : vector<8x8xf32> to vector<8xf32>
    %110 = vector.shape_cast %109 : vector<8xf32> to vector<8x1xf32>
    %111 = vector.broadcast %110 : vector<8x1xf32> to vector<8x8xf32>
    %112 = arith.subf %108, %111 : vector<8x8xf32>
    %113 = math.exp %112 : vector<8x8xf32>
    %cst_52 = arith.constant dense<0.000000e+00> : vector<8xf32>
    %114 = vector.multi_reduction <add>, %113, %cst_52 [1] : vector<8x8xf32> to vector<8xf32>
    %115 = vector.shape_cast %114 : vector<8xf32> to vector<8x1xf32>
    %116 = vector.broadcast %115 : vector<8x1xf32> to vector<8x8xf32>
    %117 = arith.divf %113, %116 : vector<8x8xf32>
    %cst_53 = arith.constant dense<0.000000e+00> : vector<8x16xf32>
    %118 = tpu.matmul %117, %107, %cst_53 {dimension_numbers = #tpu.dot_dimension_numbers<[1], [0], [0], [1], [0, 0, 1, 1], [], []>} : vector<8x8xf32>, vector<8x16xf32>, vector<8x16xf32> -> vector<8x16xf32>
    %119 = tpu.concatenate %104, %118 in 1 : vector<8x16xf32>, vector<8x16xf32> -> vector<8x32xf32>
    %120 = tpu.concatenate %89, %119 in 0 : vector<8x32xf32>, vector<8x32xf32> -> vector<16x32xf32>
    %cst_54 = arith.constant dense<0.000000e+00> : vector<16x32xf32>
    %121 = tpu.matmul %120, %38, %cst_54 {dimension_numbers = #tpu.dot_dimension_numbers<[1], [0], [0], [1], [0, 0, 1, 1], [], []>} : vector<16x32xf32>, vector<32x32xf32>, vector<16x32xf32> -> vector<16x32xf32>
    %122 = vector.broadcast %40 : vector<1x32xf32> to vector<16x32xf32>
    %123 = arith.addf %121, %122 : vector<16x32xf32>
    %124 = arith.addf %123, %32 : vector<16x32xf32>
    %cst_55 = arith.constant dense<0.000000e+00> : vector<16xf32>
    %125 = vector.multi_reduction <add>, %124, %cst_55 [1] : vector<16x32xf32> to vector<16xf32>
    %126 = vector.shape_cast %125 : vector<16xf32> to vector<16x1xf32>
    %cst_56 = arith.constant 3.200000e+01 : f32
    %127 = vector.broadcast %cst_56 : f32 to vector<16x1xf32>
    %128 = arith.divf %126, %127 : vector<16x1xf32>
    %129 = vector.broadcast %128 : vector<16x1xf32> to vector<16x32xf32>
    %130 = arith.subf %124, %129 : vector<16x32xf32>
    %131 = arith.mulf %130, %130 : vector<16x32xf32>
    %cst_57 = arith.constant dense<0.000000e+00> : vector<16xf32>
    %132 = vector.multi_reduction <add>, %131, %cst_57 [1] : vector<16x32xf32> to vector<16xf32>
    %133 = vector.shape_cast %132 : vector<16xf32> to vector<16x1xf32>
    %cst_58 = arith.constant 3.200000e+01 : f32
    %134 = vector.broadcast %cst_58 : f32 to vector<16x1xf32>
    %135 = arith.divf %133, %134 : vector<16x1xf32>
    %cst_59 = arith.constant 9.99999996E-13 : f32
    %136 = vector.broadcast %cst_59 : f32 to vector<16x1xf32>
    %137 = arith.addf %135, %136 : vector<16x1xf32>
    %138 = math.rsqrt %137 : vector<16x1xf32>
    %139 = vector.broadcast %138 : vector<16x1xf32> to vector<16x32xf32>
    %140 = arith.mulf %130, %139 : vector<16x32xf32>
    %141 = vector.broadcast %42 : vector<1x32xf32> to vector<16x32xf32>
    %142 = arith.mulf %140, %141 : vector<16x32xf32>
    %143 = vector.broadcast %44 : vector<1x32xf32> to vector<16x32xf32>
    %144 = arith.addf %142, %143 : vector<16x32xf32>
    %cst_60 = arith.constant dense<0.000000e+00> : vector<16x64xf32>
    %145 = tpu.matmul %144, %46, %cst_60 {dimension_numbers = #tpu.dot_dimension_numbers<[1], [0], [0], [1], [0, 0, 1, 1], [], []>} : vector<16x32xf32>, vector<32x64xf32>, vector<16x64xf32> -> vector<16x64xf32>
    %146 = vector.broadcast %48 : vector<1x64xf32> to vector<16x64xf32>
    %147 = arith.addf %145, %146 : vector<16x64xf32>
    %cst_61 = arith.constant 5.000000e-01 : f32
    %148 = vector.broadcast %cst_61 : f32 to vector<16x64xf32>
    %149 = arith.mulf %148, %147 : vector<16x64xf32>
    %cst_62 = arith.constant 4.471500e-02 : f32
    %150 = vector.broadcast %cst_62 : f32 to vector<16x64xf32>
    %151 = arith.mulf %150, %147 : vector<16x64xf32>
    %152 = arith.mulf %151, %147 : vector<16x64xf32>
    %153 = arith.mulf %152, %147 : vector<16x64xf32>
    %154 = arith.addf %147, %153 : vector<16x64xf32>
    %cst_63 = arith.constant 0.797884583 : f32
    %155 = vector.broadcast %cst_63 : f32 to vector<16x64xf32>
    %156 = arith.mulf %155, %154 : vector<16x64xf32>
    %157 = math.tanh %156 : vector<16x64xf32>
    %cst_64 = arith.constant 1.000000e+00 : f32
    %158 = vector.broadcast %cst_64 : f32 to vector<16x64xf32>
    %159 = arith.addf %158, %157 : vector<16x64xf32>
    %160 = arith.mulf %149, %159 : vector<16x64xf32>
    %cst_65 = arith.constant dense<0.000000e+00> : vector<16x32xf32>
    %161 = tpu.matmul %160, %50, %cst_65 {dimension_numbers = #tpu.dot_dimension_numbers<[1], [0], [0], [1], [0, 0, 1, 1], [], []>} : vector<16x64xf32>, vector<64x32xf32>, vector<16x32xf32> -> vector<16x32xf32>
    %162 = vector.broadcast %52 : vector<1x32xf32> to vector<16x32xf32>
    %163 = arith.addf %161, %162 : vector<16x32xf32>
    %164 = arith.addf %163, %144 : vector<16x32xf32>
    %cst_66 = arith.constant dense<0.000000e+00> : vector<16xf32>
    %165 = vector.multi_reduction <add>, %164, %cst_66 [1] : vector<16x32xf32> to vector<16xf32>
    %166 = vector.shape_cast %165 : vector<16xf32> to vector<16x1xf32>
    %cst_67 = arith.constant 3.200000e+01 : f32
    %167 = vector.broadcast %cst_67 : f32 to vector<16x1xf32>
    %168 = arith.divf %166, %167 : vector<16x1xf32>
    %169 = vector.broadcast %168 : vector<16x1xf32> to vector<16x32xf32>
    %170 = arith.subf %164, %169 : vector<16x32xf32>
    %171 = arith.mulf %170, %170 : vector<16x32xf32>
    %cst_68 = arith.constant dense<0.000000e+00> : vector<16xf32>
    %172 = vector.multi_reduction <add>, %171, %cst_68 [1] : vector<16x32xf32> to vector<16xf32>
    %173 = vector.shape_cast %172 : vector<16xf32> to vector<16x1xf32>
    %cst_69 = arith.constant 3.200000e+01 : f32
    %174 = vector.broadcast %cst_69 : f32 to vector<16x1xf32>
    %175 = arith.divf %173, %174 : vector<16x1xf32>
    %cst_70 = arith.constant 9.99999996E-13 : f32
    %176 = vector.broadcast %cst_70 : f32 to vector<16x1xf32>
    %177 = arith.addf %175, %176 : vector<16x1xf32>
    %178 = math.rsqrt %177 : vector<16x1xf32>
    %179 = vector.broadcast %178 : vector<16x1xf32> to vector<16x32xf32>
    %180 = arith.mulf %170, %179 : vector<16x32xf32>
    %181 = vector.broadcast %54 : vector<1x32xf32> to vector<16x32xf32>
    %182 = arith.mulf %180, %181 : vector<16x32xf32>
    %183 = vector.broadcast %56 : vector<1x32xf32> to vector<16x32xf32>
    %184 = arith.addf %182, %183 : vector<16x32xf32>
    %c1 = arith.constant 1 : index
    %c0_71 = arith.constant 0 : index
    %c0_72 = arith.constant 0 : index
    %185 = vector.load %arg3[%c1, %c0_71, %c0_72] : memref<2x208x96xf32, #tpu.memory_space<vmem>>, vector<1x32x96xf32>
    %186 = vector.shape_cast %185 : vector<1x32x96xf32> to vector<32x96xf32>
    %c1_73 = arith.constant 1 : index
    %c32_74 = arith.constant 32 : index
    %c0_75 = arith.constant 0 : index
    %187 = vector.load %arg3[%c1_73, %c32_74, %c0_75] : memref<2x208x96xf32, #tpu.memory_space<vmem>>, vector<1x1x96xf32>
    %188 = vector.shape_cast %187 : vector<1x1x96xf32> to vector<1x96xf32>
    %c1_76 = arith.constant 1 : index
    %c40_77 = arith.constant 40 : index
    %c0_78 = arith.constant 0 : index
    %189 = vector.load %arg3[%c1_76, %c40_77, %c0_78] : memref<2x208x96xf32, #tpu.memory_space<vmem>>, vector<1x32x32xf32>
    %190 = vector.shape_cast %189 : vector<1x32x32xf32> to vector<32x32xf32>
    %c1_79 = arith.constant 1 : index
    %c72_80 = arith.constant 72 : index
    %c0_81 = arith.constant 0 : index
    %191 = vector.load %arg3[%c1_79, %c72_80, %c0_81] : memref<2x208x96xf32, #tpu.memory_space<vmem>>, vector<1x1x32xf32>
    %192 = vector.shape_cast %191 : vector<1x1x32xf32> to vector<1x32xf32>
    %c1_82 = arith.constant 1 : index
    %c80_83 = arith.constant 80 : index
    %c0_84 = arith.constant 0 : index
    %193 = vector.load %arg3[%c1_82, %c80_83, %c0_84] : memref<2x208x96xf32, #tpu.memory_space<vmem>>, vector<1x1x32xf32>
    %194 = vector.shape_cast %193 : vector<1x1x32xf32> to vector<1x32xf32>
    %c1_85 = arith.constant 1 : index
    %c81_86 = arith.constant 81 : index
    %c0_87 = arith.constant 0 : index
    %195 = vector.load %arg3[%c1_85, %c81_86, %c0_87] : memref<2x208x96xf32, #tpu.memory_space<vmem>>, vector<1x1x32xf32>
    %196 = vector.shape_cast %195 : vector<1x1x32xf32> to vector<1x32xf32>
    %c1_88 = arith.constant 1 : index
    %c88_89 = arith.constant 88 : index
    %c0_90 = arith.constant 0 : index
    %197 = vector.load %arg3[%c1_88, %c88_89, %c0_90] : memref<2x208x96xf32, #tpu.memory_space<vmem>>, vector<1x32x64xf32>
    %198 = vector.shape_cast %197 : vector<1x32x64xf32> to vector<32x64xf32>
    %c1_91 = arith.constant 1 : index
    %c120_92 = arith.constant 120 : index
    %c0_93 = arith.constant 0 : index
    %199 = vector.load %arg3[%c1_91, %c120_92, %c0_93] : memref<2x208x96xf32, #tpu.memory_space<vmem>>, vector<1x1x64xf32>
    %200 = vector.shape_cast %199 : vector<1x1x64xf32> to vector<1x64xf32>
    %c1_94 = arith.constant 1 : index
    %c128_95 = arith.constant 128 : index
    %c0_96 = arith.constant 0 : index
    %201 = vector.load %arg3[%c1_94, %c128_95, %c0_96] : memref<2x208x96xf32, #tpu.memory_space<vmem>>, vector<1x64x32xf32>
    %202 = vector.shape_cast %201 : vector<1x64x32xf32> to vector<64x32xf32>
    %c1_97 = arith.constant 1 : index
    %c192_98 = arith.constant 192 : index
    %c0_99 = arith.constant 0 : index
    %203 = vector.load %arg3[%c1_97, %c192_98, %c0_99] : memref<2x208x96xf32, #tpu.memory_space<vmem>>, vector<1x1x32xf32>
    %204 = vector.shape_cast %203 : vector<1x1x32xf32> to vector<1x32xf32>
    %c1_100 = arith.constant 1 : index
    %c200_101 = arith.constant 200 : index
    %c0_102 = arith.constant 0 : index
    %205 = vector.load %arg3[%c1_100, %c200_101, %c0_102] : memref<2x208x96xf32, #tpu.memory_space<vmem>>, vector<1x1x32xf32>
    %206 = vector.shape_cast %205 : vector<1x1x32xf32> to vector<1x32xf32>
    %c1_103 = arith.constant 1 : index
    %c201_104 = arith.constant 201 : index
    %c0_105 = arith.constant 0 : index
    %207 = vector.load %arg3[%c1_103, %c201_104, %c0_105] : memref<2x208x96xf32, #tpu.memory_space<vmem>>, vector<1x1x32xf32>
    %208 = vector.shape_cast %207 : vector<1x1x32xf32> to vector<1x32xf32>
    %cst_106 = arith.constant dense<0.000000e+00> : vector<16x96xf32>
    %209 = tpu.matmul %184, %186, %cst_106 {dimension_numbers = #tpu.dot_dimension_numbers<[1], [0], [0], [1], [0, 0, 1, 1], [], []>} : vector<16x32xf32>, vector<32x96xf32>, vector<16x96xf32> -> vector<16x96xf32>
    %210 = vector.broadcast %188 : vector<1x96xf32> to vector<16x96xf32>
    %211 = arith.addf %209, %210 : vector<16x96xf32>
    %212 = vector.extract_strided_slice %211 {offsets = [0, 0], sizes = [8, 96], strides = [1, 1]} : vector<16x96xf32> to vector<8x96xf32>
    %213 = vector.extract_strided_slice %212 {offsets = [0, 0], sizes = [8, 16], strides = [1, 1]} : vector<8x96xf32> to vector<8x16xf32>
    %214 = vector.extract_strided_slice %212 {offsets = [0, 32], sizes = [8, 16], strides = [1, 1]} : vector<8x96xf32> to vector<8x16xf32>
    %215 = vector.extract_strided_slice %212 {offsets = [0, 64], sizes = [8, 16], strides = [1, 1]} : vector<8x96xf32> to vector<8x16xf32>
    %cst_107 = arith.constant dense<0.000000e+00> : vector<8x8xf32>
    %216 = tpu.matmul %213, %214, %cst_107 {dimension_numbers = #tpu.dot_dimension_numbers<[1], [1], [0], [0], [0, 0, 1, 0], [], []>} : vector<8x16xf32>, vector<8x16xf32>, vector<8x8xf32> -> vector<8x8xf32>
    %cst_108 = arith.constant dense<0xFF800000> : vector<8xf32>
    %217 = vector.multi_reduction <maximumf>, %216, %cst_108 [1] : vector<8x8xf32> to vector<8xf32>
    %218 = vector.shape_cast %217 : vector<8xf32> to vector<8x1xf32>
    %219 = vector.broadcast %218 : vector<8x1xf32> to vector<8x8xf32>
    %220 = arith.subf %216, %219 : vector<8x8xf32>
    %221 = math.exp %220 : vector<8x8xf32>
    %cst_109 = arith.constant dense<0.000000e+00> : vector<8xf32>
    %222 = vector.multi_reduction <add>, %221, %cst_109 [1] : vector<8x8xf32> to vector<8xf32>
    %223 = vector.shape_cast %222 : vector<8xf32> to vector<8x1xf32>
    %224 = vector.broadcast %223 : vector<8x1xf32> to vector<8x8xf32>
    %225 = arith.divf %221, %224 : vector<8x8xf32>
    %cst_110 = arith.constant dense<0.000000e+00> : vector<8x16xf32>
    %226 = tpu.matmul %225, %215, %cst_110 {dimension_numbers = #tpu.dot_dimension_numbers<[1], [0], [0], [1], [0, 0, 1, 1], [], []>} : vector<8x8xf32>, vector<8x16xf32>, vector<8x16xf32> -> vector<8x16xf32>
    %227 = vector.extract_strided_slice %212 {offsets = [0, 16], sizes = [8, 16], strides = [1, 1]} : vector<8x96xf32> to vector<8x16xf32>
    %228 = vector.extract_strided_slice %212 {offsets = [0, 48], sizes = [8, 16], strides = [1, 1]} : vector<8x96xf32> to vector<8x16xf32>
    %229 = vector.extract_strided_slice %212 {offsets = [0, 80], sizes = [8, 16], strides = [1, 1]} : vector<8x96xf32> to vector<8x16xf32>
    %cst_111 = arith.constant dense<0.000000e+00> : vector<8x8xf32>
    %230 = tpu.matmul %227, %228, %cst_111 {dimension_numbers = #tpu.dot_dimension_numbers<[1], [1], [0], [0], [0, 0, 1, 0], [], []>} : vector<8x16xf32>, vector<8x16xf32>, vector<8x8xf32> -> vector<8x8xf32>
    %cst_112 = arith.constant dense<0xFF800000> : vector<8xf32>
    %231 = vector.multi_reduction <maximumf>, %230, %cst_112 [1] : vector<8x8xf32> to vector<8xf32>
    %232 = vector.shape_cast %231 : vector<8xf32> to vector<8x1xf32>
    %233 = vector.broadcast %232 : vector<8x1xf32> to vector<8x8xf32>
    %234 = arith.subf %230, %233 : vector<8x8xf32>
    %235 = math.exp %234 : vector<8x8xf32>
    %cst_113 = arith.constant dense<0.000000e+00> : vector<8xf32>
    %236 = vector.multi_reduction <add>, %235, %cst_113 [1] : vector<8x8xf32> to vector<8xf32>
    %237 = vector.shape_cast %236 : vector<8xf32> to vector<8x1xf32>
    %238 = vector.broadcast %237 : vector<8x1xf32> to vector<8x8xf32>
    %239 = arith.divf %235, %238 : vector<8x8xf32>
    %cst_114 = arith.constant dense<0.000000e+00> : vector<8x16xf32>
    %240 = tpu.matmul %239, %229, %cst_114 {dimension_numbers = #tpu.dot_dimension_numbers<[1], [0], [0], [1], [0, 0, 1, 1], [], []>} : vector<8x8xf32>, vector<8x16xf32>, vector<8x16xf32> -> vector<8x16xf32>
    %241 = tpu.concatenate %226, %240 in 1 : vector<8x16xf32>, vector<8x16xf32> -> vector<8x32xf32>
    %242 = vector.extract_strided_slice %211 {offsets = [8, 0], sizes = [8, 96], strides = [1, 1]} : vector<16x96xf32> to vector<8x96xf32>
    %243 = vector.extract_strided_slice %242 {offsets = [0, 0], sizes = [8, 16], strides = [1, 1]} : vector<8x96xf32> to vector<8x16xf32>
    %244 = vector.extract_strided_slice %242 {offsets = [0, 32], sizes = [8, 16], strides = [1, 1]} : vector<8x96xf32> to vector<8x16xf32>
    %245 = vector.extract_strided_slice %242 {offsets = [0, 64], sizes = [8, 16], strides = [1, 1]} : vector<8x96xf32> to vector<8x16xf32>
    %cst_115 = arith.constant dense<0.000000e+00> : vector<8x8xf32>
    %246 = tpu.matmul %243, %244, %cst_115 {dimension_numbers = #tpu.dot_dimension_numbers<[1], [1], [0], [0], [0, 0, 1, 0], [], []>} : vector<8x16xf32>, vector<8x16xf32>, vector<8x8xf32> -> vector<8x8xf32>
    %cst_116 = arith.constant dense<0xFF800000> : vector<8xf32>
    %247 = vector.multi_reduction <maximumf>, %246, %cst_116 [1] : vector<8x8xf32> to vector<8xf32>
    %248 = vector.shape_cast %247 : vector<8xf32> to vector<8x1xf32>
    %249 = vector.broadcast %248 : vector<8x1xf32> to vector<8x8xf32>
    %250 = arith.subf %246, %249 : vector<8x8xf32>
    %251 = math.exp %250 : vector<8x8xf32>
    %cst_117 = arith.constant dense<0.000000e+00> : vector<8xf32>
    %252 = vector.multi_reduction <add>, %251, %cst_117 [1] : vector<8x8xf32> to vector<8xf32>
    %253 = vector.shape_cast %252 : vector<8xf32> to vector<8x1xf32>
    %254 = vector.broadcast %253 : vector<8x1xf32> to vector<8x8xf32>
    %255 = arith.divf %251, %254 : vector<8x8xf32>
    %cst_118 = arith.constant dense<0.000000e+00> : vector<8x16xf32>
    %256 = tpu.matmul %255, %245, %cst_118 {dimension_numbers = #tpu.dot_dimension_numbers<[1], [0], [0], [1], [0, 0, 1, 1], [], []>} : vector<8x8xf32>, vector<8x16xf32>, vector<8x16xf32> -> vector<8x16xf32>
    %257 = vector.extract_strided_slice %242 {offsets = [0, 16], sizes = [8, 16], strides = [1, 1]} : vector<8x96xf32> to vector<8x16xf32>
    %258 = vector.extract_strided_slice %242 {offsets = [0, 48], sizes = [8, 16], strides = [1, 1]} : vector<8x96xf32> to vector<8x16xf32>
    %259 = vector.extract_strided_slice %242 {offsets = [0, 80], sizes = [8, 16], strides = [1, 1]} : vector<8x96xf32> to vector<8x16xf32>
    %cst_119 = arith.constant dense<0.000000e+00> : vector<8x8xf32>
    %260 = tpu.matmul %257, %258, %cst_119 {dimension_numbers = #tpu.dot_dimension_numbers<[1], [1], [0], [0], [0, 0, 1, 0], [], []>} : vector<8x16xf32>, vector<8x16xf32>, vector<8x8xf32> -> vector<8x8xf32>
    %cst_120 = arith.constant dense<0xFF800000> : vector<8xf32>
    %261 = vector.multi_reduction <maximumf>, %260, %cst_120 [1] : vector<8x8xf32> to vector<8xf32>
    %262 = vector.shape_cast %261 : vector<8xf32> to vector<8x1xf32>
    %263 = vector.broadcast %262 : vector<8x1xf32> to vector<8x8xf32>
    %264 = arith.subf %260, %263 : vector<8x8xf32>
    %265 = math.exp %264 : vector<8x8xf32>
    %cst_121 = arith.constant dense<0.000000e+00> : vector<8xf32>
    %266 = vector.multi_reduction <add>, %265, %cst_121 [1] : vector<8x8xf32> to vector<8xf32>
    %267 = vector.shape_cast %266 : vector<8xf32> to vector<8x1xf32>
    %268 = vector.broadcast %267 : vector<8x1xf32> to vector<8x8xf32>
    %269 = arith.divf %265, %268 : vector<8x8xf32>
    %cst_122 = arith.constant dense<0.000000e+00> : vector<8x16xf32>
    %270 = tpu.matmul %269, %259, %cst_122 {dimension_numbers = #tpu.dot_dimension_numbers<[1], [0], [0], [1], [0, 0, 1, 1], [], []>} : vector<8x8xf32>, vector<8x16xf32>, vector<8x16xf32> -> vector<8x16xf32>
    %271 = tpu.concatenate %256, %270 in 1 : vector<8x16xf32>, vector<8x16xf32> -> vector<8x32xf32>
    %272 = tpu.concatenate %241, %271 in 0 : vector<8x32xf32>, vector<8x32xf32> -> vector<16x32xf32>
    %cst_123 = arith.constant dense<0.000000e+00> : vector<16x32xf32>
    %273 = tpu.matmul %272, %190, %cst_123 {dimension_numbers = #tpu.dot_dimension_numbers<[1], [0], [0], [1], [0, 0, 1, 1], [], []>} : vector<16x32xf32>, vector<32x32xf32>, vector<16x32xf32> -> vector<16x32xf32>
    %274 = vector.broadcast %192 : vector<1x32xf32> to vector<16x32xf32>
    %275 = arith.addf %273, %274 : vector<16x32xf32>
    %276 = arith.addf %275, %184 : vector<16x32xf32>
    %cst_124 = arith.constant dense<0.000000e+00> : vector<16xf32>
    %277 = vector.multi_reduction <add>, %276, %cst_124 [1] : vector<16x32xf32> to vector<16xf32>
    %278 = vector.shape_cast %277 : vector<16xf32> to vector<16x1xf32>
    %cst_125 = arith.constant 3.200000e+01 : f32
    %279 = vector.broadcast %cst_125 : f32 to vector<16x1xf32>
    %280 = arith.divf %278, %279 : vector<16x1xf32>
    %281 = vector.broadcast %280 : vector<16x1xf32> to vector<16x32xf32>
    %282 = arith.subf %276, %281 : vector<16x32xf32>
    %283 = arith.mulf %282, %282 : vector<16x32xf32>
    %cst_126 = arith.constant dense<0.000000e+00> : vector<16xf32>
    %284 = vector.multi_reduction <add>, %283, %cst_126 [1] : vector<16x32xf32> to vector<16xf32>
    %285 = vector.shape_cast %284 : vector<16xf32> to vector<16x1xf32>
    %cst_127 = arith.constant 3.200000e+01 : f32
    %286 = vector.broadcast %cst_127 : f32 to vector<16x1xf32>
    %287 = arith.divf %285, %286 : vector<16x1xf32>
    %cst_128 = arith.constant 9.99999996E-13 : f32
    %288 = vector.broadcast %cst_128 : f32 to vector<16x1xf32>
    %289 = arith.addf %287, %288 : vector<16x1xf32>
    %290 = math.rsqrt %289 : vector<16x1xf32>
    %291 = vector.broadcast %290 : vector<16x1xf32> to vector<16x32xf32>
    %292 = arith.mulf %282, %291 : vector<16x32xf32>
    %293 = vector.broadcast %194 : vector<1x32xf32> to vector<16x32xf32>
    %294 = arith.mulf %292, %293 : vector<16x32xf32>
    %295 = vector.broadcast %196 : vector<1x32xf32> to vector<16x32xf32>
    %296 = arith.addf %294, %295 : vector<16x32xf32>
    %cst_129 = arith.constant dense<0.000000e+00> : vector<16x64xf32>
    %297 = tpu.matmul %296, %198, %cst_129 {dimension_numbers = #tpu.dot_dimension_numbers<[1], [0], [0], [1], [0, 0, 1, 1], [], []>} : vector<16x32xf32>, vector<32x64xf32>, vector<16x64xf32> -> vector<16x64xf32>
    %298 = vector.broadcast %200 : vector<1x64xf32> to vector<16x64xf32>
    %299 = arith.addf %297, %298 : vector<16x64xf32>
    %cst_130 = arith.constant 5.000000e-01 : f32
    %300 = vector.broadcast %cst_130 : f32 to vector<16x64xf32>
    %301 = arith.mulf %300, %299 : vector<16x64xf32>
    %cst_131 = arith.constant 4.471500e-02 : f32
    %302 = vector.broadcast %cst_131 : f32 to vector<16x64xf32>
    %303 = arith.mulf %302, %299 : vector<16x64xf32>
    %304 = arith.mulf %303, %299 : vector<16x64xf32>
    %305 = arith.mulf %304, %299 : vector<16x64xf32>
    %306 = arith.addf %299, %305 : vector<16x64xf32>
    %cst_132 = arith.constant 0.797884583 : f32
    %307 = vector.broadcast %cst_132 : f32 to vector<16x64xf32>
    %308 = arith.mulf %307, %306 : vector<16x64xf32>
    %309 = math.tanh %308 : vector<16x64xf32>
    %cst_133 = arith.constant 1.000000e+00 : f32
    %310 = vector.broadcast %cst_133 : f32 to vector<16x64xf32>
    %311 = arith.addf %310, %309 : vector<16x64xf32>
    %312 = arith.mulf %301, %311 : vector<16x64xf32>
    %cst_134 = arith.constant dense<0.000000e+00> : vector<16x32xf32>
    %313 = tpu.matmul %312, %202, %cst_134 {dimension_numbers = #tpu.dot_dimension_numbers<[1], [0], [0], [1], [0, 0, 1, 1], [], []>} : vector<16x64xf32>, vector<64x32xf32>, vector<16x32xf32> -> vector<16x32xf32>
    %314 = vector.broadcast %204 : vector<1x32xf32> to vector<16x32xf32>
    %315 = arith.addf %313, %314 : vector<16x32xf32>
    %316 = arith.addf %315, %296 : vector<16x32xf32>
    %cst_135 = arith.constant dense<0.000000e+00> : vector<16xf32>
    %317 = vector.multi_reduction <add>, %316, %cst_135 [1] : vector<16x32xf32> to vector<16xf32>
    %318 = vector.shape_cast %317 : vector<16xf32> to vector<16x1xf32>
    %cst_136 = arith.constant 3.200000e+01 : f32
    %319 = vector.broadcast %cst_136 : f32 to vector<16x1xf32>
    %320 = arith.divf %318, %319 : vector<16x1xf32>
    %321 = vector.broadcast %320 : vector<16x1xf32> to vector<16x32xf32>
    %322 = arith.subf %316, %321 : vector<16x32xf32>
    %323 = arith.mulf %322, %322 : vector<16x32xf32>
    %cst_137 = arith.constant dense<0.000000e+00> : vector<16xf32>
    %324 = vector.multi_reduction <add>, %323, %cst_137 [1] : vector<16x32xf32> to vector<16xf32>
    %325 = vector.shape_cast %324 : vector<16xf32> to vector<16x1xf32>
    %cst_138 = arith.constant 3.200000e+01 : f32
    %326 = vector.broadcast %cst_138 : f32 to vector<16x1xf32>
    %327 = arith.divf %325, %326 : vector<16x1xf32>
    %cst_139 = arith.constant 9.99999996E-13 : f32
    %328 = vector.broadcast %cst_139 : f32 to vector<16x1xf32>
    %329 = arith.addf %327, %328 : vector<16x1xf32>
    %330 = math.rsqrt %329 : vector<16x1xf32>
    %331 = vector.broadcast %330 : vector<16x1xf32> to vector<16x32xf32>
    %332 = arith.mulf %322, %331 : vector<16x32xf32>
    %333 = vector.broadcast %206 : vector<1x32xf32> to vector<16x32xf32>
    %334 = arith.mulf %332, %333 : vector<16x32xf32>
    %335 = vector.broadcast %208 : vector<1x32xf32> to vector<16x32xf32>
    %336 = arith.addf %334, %335 : vector<16x32xf32>
    %c144 = arith.constant 144 : index
    %c0_140 = arith.constant 0 : index
    %337 = vector.load %arg2[%c144, %c0_140] : memref<232x128xf32, #tpu.memory_space<vmem>>, vector<32x32xf32>
    %c176 = arith.constant 176 : index
    %c0_141 = arith.constant 0 : index
    %338 = vector.load %arg2[%c176, %c0_141] : memref<232x128xf32, #tpu.memory_space<vmem>>, vector<1x32xf32>
    %cst_142 = arith.constant dense<0.000000e+00> : vector<16x32xf32>
    %339 = tpu.matmul %336, %337, %cst_142 {dimension_numbers = #tpu.dot_dimension_numbers<[1], [0], [0], [1], [0, 0, 1, 1], [], []>} : vector<16x32xf32>, vector<32x32xf32>, vector<16x32xf32> -> vector<16x32xf32>
    %340 = vector.broadcast %338 : vector<1x32xf32> to vector<16x32xf32>
    %341 = arith.addf %339, %340 : vector<16x32xf32>
    %cst_143 = arith.constant 5.000000e-01 : f32
    %342 = vector.broadcast %cst_143 : f32 to vector<16x32xf32>
    %343 = arith.mulf %342, %341 : vector<16x32xf32>
    %cst_144 = arith.constant 4.471500e-02 : f32
    %344 = vector.broadcast %cst_144 : f32 to vector<16x32xf32>
    %345 = arith.mulf %344, %341 : vector<16x32xf32>
    %346 = arith.mulf %345, %341 : vector<16x32xf32>
    %347 = arith.mulf %346, %341 : vector<16x32xf32>
    %348 = arith.addf %341, %347 : vector<16x32xf32>
    %cst_145 = arith.constant 0.797884583 : f32
    %349 = vector.broadcast %cst_145 : f32 to vector<16x32xf32>
    %350 = arith.mulf %349, %348 : vector<16x32xf32>
    %351 = math.tanh %350 : vector<16x32xf32>
    %cst_146 = arith.constant 1.000000e+00 : f32
    %352 = vector.broadcast %cst_146 : f32 to vector<16x32xf32>
    %353 = arith.addf %352, %351 : vector<16x32xf32>
    %354 = arith.mulf %343, %353 : vector<16x32xf32>
    %c184 = arith.constant 184 : index
    %c0_147 = arith.constant 0 : index
    %355 = vector.load %arg2[%c184, %c0_147] : memref<232x128xf32, #tpu.memory_space<vmem>>, vector<1x32xf32>
    %c185 = arith.constant 185 : index
    %c0_148 = arith.constant 0 : index
    %356 = vector.load %arg2[%c185, %c0_148] : memref<232x128xf32, #tpu.memory_space<vmem>>, vector<1x32xf32>
    %cst_149 = arith.constant dense<0.000000e+00> : vector<16xf32>
    %357 = vector.multi_reduction <add>, %354, %cst_149 [1] : vector<16x32xf32> to vector<16xf32>
    %358 = vector.shape_cast %357 : vector<16xf32> to vector<16x1xf32>
    %cst_150 = arith.constant 3.200000e+01 : f32
    %359 = vector.broadcast %cst_150 : f32 to vector<16x1xf32>
    %360 = arith.divf %358, %359 : vector<16x1xf32>
    %361 = vector.broadcast %360 : vector<16x1xf32> to vector<16x32xf32>
    %362 = arith.subf %354, %361 : vector<16x32xf32>
    %363 = arith.mulf %362, %362 : vector<16x32xf32>
    %cst_151 = arith.constant dense<0.000000e+00> : vector<16xf32>
    %364 = vector.multi_reduction <add>, %363, %cst_151 [1] : vector<16x32xf32> to vector<16xf32>
    %365 = vector.shape_cast %364 : vector<16xf32> to vector<16x1xf32>
    %cst_152 = arith.constant 3.200000e+01 : f32
    %366 = vector.broadcast %cst_152 : f32 to vector<16x1xf32>
    %367 = arith.divf %365, %366 : vector<16x1xf32>
    %cst_153 = arith.constant 9.99999996E-13 : f32
    %368 = vector.broadcast %cst_153 : f32 to vector<16x1xf32>
    %369 = arith.addf %367, %368 : vector<16x1xf32>
    %370 = math.rsqrt %369 : vector<16x1xf32>
    %371 = vector.broadcast %370 : vector<16x1xf32> to vector<16x32xf32>
    %372 = arith.mulf %362, %371 : vector<16x32xf32>
    %373 = vector.broadcast %355 : vector<1x32xf32> to vector<16x32xf32>
    %374 = arith.mulf %372, %373 : vector<16x32xf32>
    %375 = vector.broadcast %356 : vector<1x32xf32> to vector<16x32xf32>
    %376 = arith.addf %374, %375 : vector<16x32xf32>
    %c192_154 = arith.constant 192 : index
    %c0_155 = arith.constant 0 : index
    %377 = vector.load %arg2[%c192_154, %c0_155] : memref<232x128xf32, #tpu.memory_space<vmem>>, vector<32x128xf32>
    %c224 = arith.constant 224 : index
    %c0_156 = arith.constant 0 : index
    %378 = vector.load %arg2[%c224, %c0_156] : memref<232x128xf32, #tpu.memory_space<vmem>>, vector<1x128xf32>
    %cst_157 = arith.constant dense<0.000000e+00> : vector<16x128xf32>
    %379 = tpu.matmul %376, %377, %cst_157 {dimension_numbers = #tpu.dot_dimension_numbers<[1], [0], [0], [1], [0, 0, 1, 1], [], []>} : vector<16x32xf32>, vector<32x128xf32>, vector<16x128xf32> -> vector<16x128xf32>
    %380 = vector.broadcast %378 : vector<1x128xf32> to vector<16x128xf32>
    %381 = arith.addf %379, %380 : vector<16x128xf32>
    %cst_158 = arith.constant dense<0xFF800000> : vector<16xf32>
    %382 = vector.multi_reduction <maximumf>, %381, %cst_158 [1] : vector<16x128xf32> to vector<16xf32>
    %383 = vector.shape_cast %382 : vector<16xf32> to vector<16x1xf32>
    %384 = vector.broadcast %383 : vector<16x1xf32> to vector<16x128xf32>
    %385 = arith.subf %381, %384 : vector<16x128xf32>
    %386 = math.exp %385 : vector<16x128xf32>
    %cst_159 = arith.constant dense<0.000000e+00> : vector<16xf32>
    %387 = vector.multi_reduction <add>, %386, %cst_159 [1] : vector<16x128xf32> to vector<16xf32>
    %388 = vector.shape_cast %387 : vector<16xf32> to vector<16x1xf32>
    %389 = vector.broadcast %388 : vector<16x1xf32> to vector<16x128xf32>
    %390 = arith.divf %386, %389 : vector<16x128xf32>
    %c0_160 = arith.constant 0 : index
    %c0_161 = arith.constant 0 : index
    %391 = vector.load %arg4[%c0_160, %c0_161] : memref<16x128xf32, #tpu.memory_space<vmem>>, vector<16x128xf32>
    tpu.vector_store %arg4[%c0_160, %c0_161], %390 {strides = array<i32>} : memref<16x128xf32, #tpu.memory_space<vmem>>, vector<16x128xf32>,
    %392 = vector.broadcast %383 : vector<16x1xf32> to vector<16x128xf32>
    %393 = arith.cmpf oeq, %381, %392 : vector<16x128xf32>
    %c2147483647_i32 = arith.constant 2147483647 : i32
    %394 = vector.broadcast %c2147483647_i32 : i32 to vector<16x128xi32>
    %395 = arith.select %393, %1, %394 : vector<16x128xi1>, vector<16x128xi32>
    %cst_162 = arith.constant dense<2147483647> : vector<16xi32>
    %396 = vector.multi_reduction <minsi>, %395, %cst_162 [1] : vector<16x128xi32> to vector<16xi32>
    %397 = vector.shape_cast %396 : vector<16xi32> to vector<16x1xi32>
    %c0_163 = arith.constant 0 : index
    %c0_164 = arith.constant 0 : index
    %398 = vector.load %arg5[%c0_163, %c0_164] : memref<16x1xi32, #tpu.memory_space<vmem>>, vector<16x1xi32>
    tpu.vector_store %arg5[%c0_163, %c0_164], %397 {strides = array<i32>} : memref<16x1xi32, #tpu.memory_space<vmem>>, vector<16x1xi32>,
    return
  }
  func.func @transform_0(%arg0: i32) -> (i32, i32) {
    %c0_i32 = arith.constant 0 : i32
    %c0_i32_0 = arith.constant 0 : i32
    %c0_i32_1 = arith.constant 0 : i32
    return %c0_i32, %c0_i32_0 : i32, i32
  }
  func.func @transform_1(%arg0: i32) -> (i32, i32) {
    %c0_i32 = arith.constant 0 : i32
    %c0_i32_0 = arith.constant 0 : i32
    %c0_i32_1 = arith.constant 0 : i32
    return %c0_i32, %c0_i32_0 : i32, i32
  }
  func.func @transform_2(%arg0: i32) -> (i32, i32, i32) {
    %c0_i32 = arith.constant 0 : i32
    %c0_i32_0 = arith.constant 0 : i32
    %c0_i32_1 = arith.constant 0 : i32
    %c0_i32_2 = arith.constant 0 : i32
    return %c0_i32, %c0_i32_0, %c0_i32_1 : i32, i32, i32
  }
  func.func @transform_3(%arg0: i32) -> (i32, i32) {
    %c0_i32 = arith.constant 0 : i32
    %c0_i32_0 = arith.constant 0 : i32
    %c0_i32_1 = arith.constant 0 : i32
    return %c0_i32, %c0_i32_0 : i32, i32
  }
  func.func @transform_4(%arg0: i32) -> (i32, i32) {
    %c0_i32 = arith.constant 0 : i32
    %c0_i32_0 = arith.constant 0 : i32
    %c0_i32_1 = arith.constant 0 : i32
    return %c0_i32, %c0_i32_0 : i32, i32
  }
}

</mosaic_0001>

<llo_original>
// kernel: mlm_cls_forward.1
$region0: #{mlm_cls_forward.1}
  #allocation0 [shape = 'u32[]', space=smem, size = 0x4, offset = 0x4, fixed_abs, tag = 'smem constant byte address 0x4 - core index']
  #allocation1 [shape = 'u32[72,128]{1,0:T(1,128)}', space=vmem, size = 0x9000, scoped, tag = 'internal scratch']
  %s0 = inlined_call_operand.vmem [shape: s32[16,1], index: 0, kind: input, shape index: {}]
  %s1 = inlined_call_operand.vmem [shape: f32[232,128], index: 1, kind: input, shape index: {}]
  %s2 = inlined_call_operand.vmem [shape: f32[2,208,96], index: 2, kind: input, shape index: {}]
  %s3 = inlined_call_operand.hbm [shape: f32[16,128], index: 3, kind: output, shape index: {0}]
  %s4 = inlined_call_operand.vmem [shape: s32[16,1], index: 4, kind: output, shape index: {1}]
  %5 = xla_tuple %s3, %s4
  %s6 = sld [smem:[#allocation0]]
  $region30: #{mlm_cls_forward.1} parent=0
    _
  %s8 = ssub.s32 1, %s6
  %s9 = scalar_select 0, %s8, %s6
  $region1: #{mlm_cls_forward.1} parent=0
    #allocation2 [shape = 'u8[8192]{0}', space=vmem, size = 0x2000, scoped, tag = 'output window, operand 0, single buffered']
    #allocation3 [shape = 's32[1]{0}', space=sflag, size = 0x4, scoped, tag = 'scoped memory for mlm_cls_forward.1']
    %10 = vsyncpa [#allocation3], 0
    // Predicated region
    $region2: #{mlm_cls_forward.1} parent=1 // pred_check
      _
    $region3: #{mlm_cls_forward.1} parent=1 // pred_check_branch
      %12 = sbr.rel (0) target = $region5
    $region4: #{mlm_cls_forward.1} parent=1 // pred_region
      _
    $region5: #{mlm_cls_forward.1} parent=1 // pred_fallthru
      _
    // Predicated region
    $region6: #{mlm_cls_forward.1} parent=1 // pred_check
      _
    $region7: #{mlm_cls_forward.1} parent=1 // pred_check_branch
      %14 = sbr.rel (0) target = $region9
    $region8: #{mlm_cls_forward.1} parent=1 // pred_region
      _
    $region9: #{mlm_cls_forward.1} parent=1 // pred_fallthru
      _
    // Predicated region
    $region10: #{mlm_cls_forward.1} parent=1 // pred_check
      _
    $region11: #{mlm_cls_forward.1} parent=1 // pred_check_branch
      %16 = sbr.rel (0) target = $region13
    $region12: #{mlm_cls_forward.1} parent=1 // pred_region
      _
    $region13: #{mlm_cls_forward.1} parent=1 // pred_fallthru
      _
    %v17 = vld [vmem:[%s0] sm:$0xff]
    %v18 = vld [vmem:[%s0 + $0x8] sm:$0xff]
    %v19 = vlaneseq
    %v20 = vand.u32 %v19, 127
    %21 = vset.pattern.permute.xlu0 0
    %22 = vperm.xlu0 %21, %v17
    %v23 = vpop.permute.xlu0 %22
    %24 = vset.pattern.permute.xlu0 0
    %25 = vperm.xlu0 %24, %v18
    %v26 = vpop.permute.xlu0 %25
    %vm27 = vcmp.eq.s32.totalorder %v20, %v23
    %vm28 = vcmp.eq.s32.totalorder %v20, %v26
    %v29 = vsel %vm27, 1, 0
    %v30 = vsel %vm28, 1, 0
    %v31 = vcvt.s32.f32 %v29
    %v32 = vcvt.s32.f32 %v30
    %v33 = vld [vmem:[%s1] sm:$0xff]
    %v34 = vld [vmem:[%s1 + $0x8] sm:$0xff]
    %v35 = vld [vmem:[%s1 + $0x10] sm:$0xff]
    %v36 = vld [vmem:[%s1 + $0x18] sm:$0xff]
    %v37 = vld [vmem:[%s1 + $0x20] sm:$0xff]
    %v38 = vld [vmem:[%s1 + $0x28] sm:$0xff]
    %v39 = vld [vmem:[%s1 + $0x30] sm:$0xff]
    %v40 = vld [vmem:[%s1 + $0x38] sm:$0xff]
    %v41 = vld [vmem:[%s1 + $0x40] sm:$0xff]
    %v42 = vld [vmem:[%s1 + $0x48] sm:$0xff]
    %v43 = vld [vmem:[%s1 + $0x50] sm:$0xff]
    %v44 = vld [vmem:[%s1 + $0x58] sm:$0xff]
    %v45 = vld [vmem:[%s1 + $0x60] sm:$0xff]
    %v46 = vld [vmem:[%s1 + $0x68] sm:$0xff]
    %v47 = vld [vmem:[%s1 + $0x70] sm:$0xff]
    %v48 = vld [vmem:[%s1 + $0x78] sm:$0xff]
    %v49 = vld [vmem:[%s1 + $0x80] sm:$0xff]
    %50 = vmatpush.msra.mxu0 %v48
    %51 = vmatpush.msra.mxu0 %v47
    %52 = vmatpush.msra.mxu0 %v46
    %53 = vmatpush.msra.mxu0 %v45
    %54 = vmatpush.msra.mxu0 %v44
    %55 = vmatpush.msra.mxu0 %v43
    %56 = vmatpush.msra.mxu0 %v42
    %57 = vmatpush.msra.mxu0 %v41
    %58 = vmatpush.msra.mxu0 %v40
    %59 = vmatpush.msra.mxu0 %v39
    %60 = vmatpush.msra.mxu0 %v38
    %61 = vmatpush.msra.mxu0 %v37
    %62 = vmatpush.msra.mxu0 %v36
    %63 = vmatpush.msra.mxu0 %v35
    %64 = vmatpush.msra.mxu0 %v34
    %65 = vmatpush.msra.mxu0 %v33
    %66 = vmatmul.f32.gmra.mxu0 %v31
    %v67 = vpop.f32.mrf.mxu0
    %v68 = vadd.f32 %v49, %v67
    %69 = vmatmul.f32.gmra.mxu0 %v32
    %v70 = vpop.f32.mrf.mxu0
    %v71 = vadd.f32 %v49, %v70
    %72 = vdwg.mxu0
    %v73 = vld [vmem:[%s1 + $0x88] sm:$0x1]
    %v74 = vld [vmem:[%s1 + $0x89] sm:$0x1]
    %vm75 = vcmask 261120
    %v76 = vsel %vm75, %v68, 0.0
    %77 = vadd.xlane.f32.xlu0 %v76
    %v78 = vpop.xlane.xlu0 %77
    %v79 = vsel %vm75, %v71, 0.0
    %80 = vadd.xlane.f32.xlu0 %v79
    %v81 = vpop.xlane.xlu0 %80
    %v82 = vrcp.pop 32.0
    %v83 = vmul.f32 32.0, %v82
    %v84 = vsub.f32 1.0, %v83
    %v85 = vmul.f32 %v82, %v84
    %v86 = vadd.f32 %v82, %v85
    %vm87 = vweird.f32 %v82
    %v88 = vsel %vm87, %v82, %v86
    %v89 = vmul.f32 %v78, %v88
    %v90 = vmul.f32 %v81, %v88
    %v91 = vsub.f32 %v68, %v89
    %v92 = vsub.f32 %v71, %v90
    %v93 = vmul.f32 %v91, %v91
    %v94 = vmul.f32 %v92, %v92
    %v95 = vsel %vm75, %v93, 0.0
    %96 = vadd.xlane.f32.xlu0 %v95
    %v97 = vpop.xlane.xlu0 %96
    %v98 = vsel %vm75, %v94, 0.0
    %99 = vadd.xlane.f32.xlu0 %v98
    %v100 = vpop.xlane.xlu0 %99
    %v101 = vmul.f32 %v97, %v88
    %v102 = vmul.f32 %v100, %v88
    %v103 = vadd.f32 %v101, 1e-12
    %v104 = vadd.f32 %v102, 1e-12
    %v105 = vrsqrt.pop %v103
    %v106 = vmul.f32 %v105, %v103
    %v107 = vmul.f32 %v106, %v105
    %v108 = vmul.f32 0.5, %v107
    %v109 = vsub.f32 1.5, %v108
    %v110 = vmul.f32 %v105, %v109
    %vm111 = vweird.f32 %v103
    %vm112 = vweird.f32 %v105
    %vm113 = vmor %vm111, %vm112
    %v114 = vsel %vm113, %v105, %v110
    %v115 = vrsqrt.pop %v104
    %v116 = vmul.f32 %v115, %v104
    %v117 = vmul.f32 %v116, %v115
    %v118 = vmul.f32 0.5, %v117
    %v119 = vsub.f32 1.5, %v118
    %v120 = vmul.f32 %v115, %v119
    %vm121 = vweird.f32 %v104
    %vm122 = vweird.f32 %v115
    %vm123 = vmor %vm121, %vm122
    %v124 = vsel %vm123, %v115, %v120
    %v125 = vmul.f32 %v91, %v114
    %v126 = vmul.f32 %v92, %v124
    %v127 = vperm.slane %v73, 0
    %v128 = vmul.f32 %v125, %v127
    %v129 = vmul.f32 %v126, %v127
    %v130 = vperm.slane %v74, 0
    %v131 = vadd.f32 %v128, %v130
    %v132 = vadd.f32 %v129, %v130
    %v133 = vld [vmem:[%s2] sm:$0xff]
    %v134 = vld [vmem:[%s2 + $0x8] sm:$0xff]
    %v135 = vld [vmem:[%s2 + $0x10] sm:$0xff]
    %v136 = vld [vmem:[%s2 + $0x18] sm:$0xff]
    %v137 = vld [vmem:[%s2 + $0x20] sm:$0x1]
    %v138 = vld [vmem:[%s2 + $0x28] sm:$0xff]
    %v139 = vld [vmem:[%s2 + $0x30] sm:$0xff]
    %v140 = vld [vmem:[%s2 + $0x38] sm:$0xff]
    %v141 = vld [vmem:[%s2 + $0x40] sm:$0xff]
    %v142 = vld [vmem:[%s2 + $0x48] sm:$0x1]
    %v143 = vld [vmem:[%s2 + $0x50] sm:$0x1]
    %v144 = vld [vmem:[%s2 + $0x51] sm:$0x1]
    %v145 = vld [vmem:[%s2 + $0x58] sm:$0xff]
    %v146 = vld [vmem:[%s2 + $0x60] sm:$0xff]
    %v147 = vld [vmem:[%s2 + $0x68] sm:$0xff]
    %v148 = vld [vmem:[%s2 + $0x70] sm:$0xff]
    %v149 = vld [vmem:[%s2 + $0x78] sm:$0x1]
    %v150 = vld [vmem:[%s2 + $0x80] sm:$0xff]
    %v151 = vld [vmem:[%s2 + $0x88] sm:$0xff]
    %v152 = vld [vmem:[%s2 + $0x90] sm:$0xff]
    %v153 = vld [vmem:[%s2 + $0x98] sm:$0xff]
    %v154 = vld [vmem:[%s2 + $0xa0] sm:$0xff]
    %v155 = vld [vmem:[%s2 + $0xa8] sm:$0xff]
    %v156 = vld [vmem:[%s2 + $0xb0] sm:$0xff]
    %v157 = vld [vmem:[%s2 + $0xb8] sm:$0xff]
    %v158 = vld [vmem:[%s2 + $0xc0] sm:$0x1]
    %v159 = vld [vmem:[%s2 + $0xc8] sm:$0x1]
    %v160 = vld [vmem:[%s2 + $0xc9] sm:$0x1]
    %v161 = vperm.slane %v137, 0
    %v163 = vsel %vm75, %v131, 0
    %v166 = vsel %vm75, %v132, 0
    %168 = vmatpush.msra.mxu0 0.0
    %169 = vmatpush.msra.mxu0 0.0
    %170 = vmatpush.msra.mxu0 0.0
    %171 = vmatpush.msra.mxu0 0.0
    %172 = vmatpush.msra.mxu0 0.0
    %173 = vmatpush.msra.mxu0 0.0
    %174 = vmatpush.msra.mxu0 0.0
    %175 = vmatpush.msra.mxu0 0.0
    %176 = vmatpush.msra.mxu0 0.0
    %177 = vmatpush.msra.mxu0 0.0
    %178 = vmatpush.msra.mxu0 0.0
    %179 = vmatpush.msra.mxu0 0.0
    %180 = vmatpush.msra.mxu0 %v136
    %181 = vmatpush.msra.mxu0 %v135
    %182 = vmatpush.msra.mxu0 %v134
    %183 = vmatpush.msra.mxu0 %v133
    %184 = vmatmul.f32.gmra.mxu0 %v163
    %v185 = vpop.f32.mrf.mxu0
    %v186 = vadd.f32 %v161, %v185
    %187 = vmatmul.f32.gmra.mxu0 %v166
    %v188 = vpop.f32.mrf.mxu0
    %v189 = vadd.f32 %v161, %v188
    %190 = vdwg.mxu0
    %192 = vrot.lane.b32.xlu0 %v186, 96
    %v193 = vpop.permute.xlu0 %192
    %vm194 = vcmask 130048
    %v195 = vsel %vm194, %v186, 0
    %v197 = vsel %vm194, %v193, 0
    %199 = vmatpush.xpose.msra.mxu0 0.0
    %200 = vmatpush.xpose.msra.mxu0 0.0
    %201 = vmatpush.xpose.msra.mxu0 0.0
    %202 = vmatpush.xpose.msra.mxu0 0.0
    %203 = vmatpush.xpose.msra.mxu0 0.0
    %204 = vmatpush.xpose.msra.mxu0 0.0
    %205 = vmatpush.xpose.msra.mxu0 0.0
    %206 = vmatpush.xpose.msra.mxu0 0.0
    %207 = vmatpush.xpose.msra.mxu0 0.0
    %208 = vmatpush.xpose.msra.mxu0 0.0
    %209 = vmatpush.xpose.msra.mxu0 0.0
    %210 = vmatpush.xpose.msra.mxu0 0.0
    %211 = vmatpush.xpose.msra.mxu0 0.0
    %212 = vmatpush.xpose.msra.mxu0 0.0
    %213 = vmatpush.xpose.msra.mxu0 0.0
    %214 = vmatpush.xpose.msra.mxu0 %v197
    %215 = vmatmul.f32.gmra.mxu0 %v195
    %v216 = vpop.f32.mrf.mxu0
    %v217 = vadd.f32 0.0, %v216
    %218 = vdwg.mxu0
    %vm219 = vcmask 64512
    %v220 = vsel %vm219, %v217, -inf
    %221 = vmax.xlane.f32.xlu0 %v220
    %v222 = vpop.xlane.xlu0 %221
    %v223 = vsub.f32 %v217, %v222
    %v224 = vmul.f32 %v223, 1.442695
    %v225 = vpow.pop %v224
    %v226 = vsel %vm219, %v225, 0.0
    %227 = vadd.xlane.f32.xlu0 %v226
    %v228 = vpop.xlane.xlu0 %227
    %v229 = vrcp.pop %v228
    %v230 = vmul.f32 %v228, %v229
    %v231 = vsub.f32 1.0, %v230
    %v232 = vmul.f32 %v229, %v231
    %v233 = vadd.f32 %v229, %v232
    %vm234 = vweird.f32 %v228
    %vm235 = vweird.f32 %v229
    %vm236 = vmor %vm234, %vm235
    %v237 = vsel %vm236, %v229, %v233
    %v238 = vand.u32 2147483647, %v228
    %vm239 = vcmp.eq.f32.partialorder %v238, 8.507059e+37
    %v240 = vand.u32 %v228, 2147483648
    %v241 = vor.u32 1.1754944e-38, %v240
    %v242 = vsel %vm239, %v241, %v237
    %v243 = vmul.f32 %v225, %v242
    %244 = vrot.lane.b32.xlu0 %v186, 64
    %v245 = vpop.permute.xlu0 %244
    %v248 = vsel %vm219, %v243, 0
    %250 = vmatpush.msra.mxu0 0.0
    %251 = vmatpush.msra.mxu0 0.0
    %252 = vmatpush.msra.mxu0 0.0
    %253 = vmatpush.msra.mxu0 0.0
    %254 = vmatpush.msra.mxu0 0.0
    %255 = vmatpush.msra.mxu0 0.0
    %256 = vmatpush.msra.mxu0 0.0
    %257 = vmatpush.msra.mxu0 0.0
    %258 = vmatpush.msra.mxu0 0.0
    %259 = vmatpush.msra.mxu0 0.0
    %260 = vmatpush.msra.mxu0 0.0
    %261 = vmatpush.msra.mxu0 0.0
    %262 = vmatpush.msra.mxu0 0.0
    %263 = vmatpush.msra.mxu0 0.0
    %264 = vmatpush.msra.mxu0 0.0
    %265 = vmatpush.msra.mxu0 %v245
    %266 = vmatmul.f32.gmra.mxu0 %v248
    %v267 = vpop.f32.mrf.mxu0
    %v268 = vadd.f32 0.0, %v267
    %269 = vdwg.mxu0
    %270 = vrot.lane.b32.xlu0 %v186, 112
    %v271 = vpop.permute.xlu0 %270
    %272 = vrot.lane.b32.xlu0 %v186, 80
    %v273 = vpop.permute.xlu0 %272
    %v274 = vsel %vm194, %v271, 0
    %v276 = vsel %vm194, %v273, 0
    %278 = vmatpush.xpose.msra.mxu0 0.0
    %279 = vmatpush.xpose.msra.mxu0 0.0
    %280 = vmatpush.xpose.msra.mxu0 0.0
    %281 = vmatpush.xpose.msra.mxu0 0.0
    %282 = vmatpush.xpose.msra.mxu0 0.0
    %283 = vmatpush.xpose.msra.mxu0 0.0
    %284 = vmatpush.xpose.msra.mxu0 0.0
    %285 = vmatpush.xpose.msra.mxu0 0.0
    %286 = vmatpush.xpose.msra.mxu0 0.0
    %287 = vmatpush.xpose.msra.mxu0 0.0
    %288 = vmatpush.xpose.msra.mxu0 0.0
    %289 = vmatpush.xpose.msra.mxu0 0.0
    %290 = vmatpush.xpose.msra.mxu0 0.0
    %291 = vmatpush.xpose.msra.mxu0 0.0
    %292 = vmatpush.xpose.msra.mxu0 0.0
    %293 = vmatpush.xpose.msra.mxu0 %v276
    %294 = vmatmul.f32.gmra.mxu0 %v274
    %v295 = vpop.f32.mrf.mxu0
    %v296 = vadd.f32 0.0, %v295
    %297 = vdwg.mxu0
    %v298 = vsel %vm219, %v296, -inf
    %299 = vmax.xlane.f32.xlu0 %v298
    %v300 = vpop.xlane.xlu0 %299
    %v301 = vsub.f32 %v296, %v300
    %v302 = vmul.f32 %v301, 1.442695
    %v303 = vpow.pop %v302
    %v304 = vsel %vm219, %v303, 0.0
    %305 = vadd.xlane.f32.xlu0 %v304
    %v306 = vpop.xlane.xlu0 %305
    %v307 = vrcp.pop %v306
    %v308 = vmul.f32 %v306, %v307
    %v309 = vsub.f32 1.0, %v308
    %v310 = vmul.f32 %v307, %v309
    %v311 = vadd.f32 %v307, %v310
    %vm312 = vweird.f32 %v306
    %vm313 = vweird.f32 %v307
    %vm314 = vmor %vm312, %vm313
    %v315 = vsel %vm314, %v307, %v311
    %v316 = vand.u32 2147483647, %v306
    %vm317 = vcmp.eq.f32.partialorder %v316, 8.507059e+37
    %v318 = vand.u32 %v306, 2147483648
    %v319 = vor.u32 1.1754944e-38, %v318
    %v320 = vsel %vm317, %v319, %v315
    %v321 = vmul.f32 %v303, %v320
    %322 = vrot.lane.b32.xlu0 %v186, 48
    %v323 = vpop.permute.xlu0 %322
    %v326 = vsel %vm219, %v321, 0
    %328 = vmatpush.msra.mxu0 0.0
    %329 = vmatpush.msra.mxu0 0.0
    %330 = vmatpush.msra.mxu0 0.0
    %331 = vmatpush.msra.mxu0 0.0
    %332 = vmatpush.msra.mxu0 0.0
    %333 = vmatpush.msra.mxu0 0.0
    %334 = vmatpush.msra.mxu0 0.0
    %335 = vmatpush.msra.mxu0 0.0
    %336 = vmatpush.msra.mxu0 0.0
    %337 = vmatpush.msra.mxu0 0.0
    %338 = vmatpush.msra.mxu0 0.0
    %339 = vmatpush.msra.mxu0 0.0
    %340 = vmatpush.msra.mxu0 0.0
    %341 = vmatpush.msra.mxu0 0.0
    %342 = vmatpush.msra.mxu0 0.0
    %343 = vmatpush.msra.mxu0 %v323
    %344 = vmatmul.f32.gmra.mxu0 %v326
    %v345 = vpop.f32.mrf.mxu0
    %v346 = vadd.f32 0.0, %v345
    %347 = vdwg.mxu0
    %349 = vrot.lane.b32.xlu0 %v346, 16
    %v350 = vpop.permute.xlu0 %349
    %v352 = vsel %vm194, %v268, %v350
    %354 = vrot.lane.b32.xlu0 %v189, 96
    %v355 = vpop.permute.xlu0 %354
    %v356 = vsel %vm194, %v189, 0
    %v358 = vsel %vm194, %v355, 0
    %360 = vmatpush.xpose.msra.mxu0 0.0
    %361 = vmatpush.xpose.msra.mxu0 0.0
    %362 = vmatpush.xpose.msra.mxu0 0.0
    %363 = vmatpush.xpose.msra.mxu0 0.0
    %364 = vmatpush.xpose.msra.mxu0 0.0
    %365 = vmatpush.xpose.msra.mxu0 0.0
    %366 = vmatpush.xpose.msra.mxu0 0.0
    %367 = vmatpush.xpose.msra.mxu0 0.0
    %368 = vmatpush.xpose.msra.mxu0 0.0
    %369 = vmatpush.xpose.msra.mxu0 0.0
    %370 = vmatpush.xpose.msra.mxu0 0.0
    %371 = vmatpush.xpose.msra.mxu0 0.0
    %372 = vmatpush.xpose.msra.mxu0 0.0
    %373 = vmatpush.xpose.msra.mxu0 0.0
    %374 = vmatpush.xpose.msra.mxu0 0.0
    %375 = vmatpush.xpose.msra.mxu0 %v358
    %376 = vmatmul.f32.gmra.mxu0 %v356
    %v377 = vpop.f32.mrf.mxu0
    %v378 = vadd.f32 0.0, %v377
    %379 = vdwg.mxu0
    %v380 = vsel %vm219, %v378, -inf
    %381 = vmax.xlane.f32.xlu0 %v380
    %v382 = vpop.xlane.xlu0 %381
    %v383 = vsub.f32 %v378, %v382
    %v384 = vmul.f32 %v383, 1.442695
    %v385 = vpow.pop %v384
    %v386 = vsel %vm219, %v385, 0.0
    %387 = vadd.xlane.f32.xlu0 %v386
    %v388 = vpop.xlane.xlu0 %387
    %v389 = vrcp.pop %v388
    %v390 = vmul.f32 %v388, %v389
    %v391 = vsub.f32 1.0, %v390
    %v392 = vmul.f32 %v389, %v391
    %v393 = vadd.f32 %v389, %v392
    %vm394 = vweird.f32 %v388
    %vm395 = vweird.f32 %v389
    %vm396 = vmor %vm394, %vm395
    %v397 = vsel %vm396, %v389, %v393
    %v398 = vand.u32 2147483647, %v388
    %vm399 = vcmp.eq.f32.partialorder %v398, 8.507059e+37
    %v400 = vand.u32 %v388, 2147483648
    %v401 = vor.u32 1.1754944e-38, %v400
    %v402 = vsel %vm399, %v401, %v397
    %v403 = vmul.f32 %v385, %v402
    %404 = vrot.lane.b32.xlu0 %v189, 64
    %v405 = vpop.permute.xlu0 %404
    %v408 = vsel %vm219, %v403, 0
    %410 = vmatpush.msra.mxu0 0.0
    %411 = vmatpush.msra.mxu0 0.0
    %412 = vmatpush.msra.mxu0 0.0
    %413 = vmatpush.msra.mxu0 0.0
    %414 = vmatpush.msra.mxu0 0.0
    %415 = vmatpush.msra.mxu0 0.0
    %416 = vmatpush.msra.mxu0 0.0
    %417 = vmatpush.msra.mxu0 0.0
    %418 = vmatpush.msra.mxu0 0.0
    %419 = vmatpush.msra.mxu0 0.0
    %420 = vmatpush.msra.mxu0 0.0
    %421 = vmatpush.msra.mxu0 0.0
    %422 = vmatpush.msra.mxu0 0.0
    %423 = vmatpush.msra.mxu0 0.0
    %424 = vmatpush.msra.mxu0 0.0
    %425 = vmatpush.msra.mxu0 %v405
    %426 = vmatmul.f32.gmra.mxu0 %v408
    %v427 = vpop.f32.mrf.mxu0
    %v428 = vadd.f32 0.0, %v427
    %429 = vdwg.mxu0
    %430 = vrot.lane.b32.xlu0 %v189, 112
    %v431 = vpop.permute.xlu0 %430
    %432 = vrot.lane.b32.xlu0 %v189, 80
    %v433 = vpop.permute.xlu0 %432
    %v434 = vsel %vm194, %v431, 0
    %v436 = vsel %vm194, %v433, 0
    %438 = vmatpush.xpose.msra.mxu0 0.0
    %439 = vmatpush.xpose.msra.mxu0 0.0
    %440 = vmatpush.xpose.msra.mxu0 0.0
    %441 = vmatpush.xpose.msra.mxu0 0.0
    %442 = vmatpush.xpose.msra.mxu0 0.0
    %443 = vmatpush.xpose.msra.mxu0 0.0
    %444 = vmatpush.xpose.msra.mxu0 0.0
    %445 = vmatpush.xpose.msra.mxu0 0.0
    %446 = vmatpush.xpose.msra.mxu0 0.0
    %447 = vmatpush.xpose.msra.mxu0 0.0
    %448 = vmatpush.xpose.msra.mxu0 0.0
    %449 = vmatpush.xpose.msra.mxu0 0.0
    %450 = vmatpush.xpose.msra.mxu0 0.0
    %451 = vmatpush.xpose.msra.mxu0 0.0
    %452 = vmatpush.xpose.msra.mxu0 0.0
    %453 = vmatpush.xpose.msra.mxu0 %v436
    %454 = vmatmul.f32.gmra.mxu0 %v434
    %v455 = vpop.f32.mrf.mxu0
    %v456 = vadd.f32 0.0, %v455
    %457 = vdwg.mxu0
    %v458 = vsel %vm219, %v456, -inf
    %459 = vmax.xlane.f32.xlu0 %v458
    %v460 = vpop.xlane.xlu0 %459
    %v461 = vsub.f32 %v456, %v460
    %v462 = vmul.f32 %v461, 1.442695
    %v463 = vpow.pop %v462
    %v464 = vsel %vm219, %v463, 0.0
    %465 = vadd.xlane.f32.xlu0 %v464
    %v466 = vpop.xlane.xlu0 %465
    %v467 = vrcp.pop %v466
    %v468 = vmul.f32 %v466, %v467
    %v469 = vsub.f32 1.0, %v468
    %v470 = vmul.f32 %v467, %v469
    %v471 = vadd.f32 %v467, %v470
    %vm472 = vweird.f32 %v466
    %vm473 = vweird.f32 %v467
    %vm474 = vmor %vm472, %vm473
    %v475 = vsel %vm474, %v467, %v471
    %v476 = vand.u32 2147483647, %v466
    %vm477 = vcmp.eq.f32.partialorder %v476, 8.507059e+37
    %v478 = vand.u32 %v466, 2147483648
    %v479 = vor.u32 1.1754944e-38, %v478
    %v480 = vsel %vm477, %v479, %v475
    %v481 = vmul.f32 %v463, %v480
    %482 = vrot.lane.b32.xlu0 %v189, 48
    %v483 = vpop.permute.xlu0 %482
    %v486 = vsel %vm219, %v481, 0
    %488 = vmatpush.msra.mxu0 0.0
    %489 = vmatpush.msra.mxu0 0.0
    %490 = vmatpush.msra.mxu0 0.0
    %491 = vmatpush.msra.mxu0 0.0
    %492 = vmatpush.msra.mxu0 0.0
    %493 = vmatpush.msra.mxu0 0.0
    %494 = vmatpush.msra.mxu0 0.0
    %495 = vmatpush.msra.mxu0 0.0
    %496 = vmatpush.msra.mxu0 0.0
    %497 = vmatpush.msra.mxu0 0.0
    %498 = vmatpush.msra.mxu0 0.0
    %499 = vmatpush.msra.mxu0 0.0
    %500 = vmatpush.msra.mxu0 0.0
    %501 = vmatpush.msra.mxu0 0.0
    %502 = vmatpush.msra.mxu0 0.0
    %503 = vmatpush.msra.mxu0 %v483
    %504 = vmatmul.f32.gmra.mxu0 %v486
    %v505 = vpop.f32.mrf.mxu0
    %v506 = vadd.f32 0.0, %v505
    %507 = vdwg.mxu0
    %509 = vrot.lane.b32.xlu0 %v506, 16
    %v510 = vpop.permute.xlu0 %509
    %v512 = vsel %vm194, %v428, %v510
    %v513 = vperm.slane %v142, 0
    %v515 = vsel %vm75, %v352, 0
    %v518 = vsel %vm75, %v512, 0
    %520 = vmatpush.msra.mxu0 0.0
    %521 = vmatpush.msra.mxu0 0.0
    %522 = vmatpush.msra.mxu0 0.0
    %523 = vmatpush.msra.mxu0 0.0
    %524 = vmatpush.msra.mxu0 0.0
    %525 = vmatpush.msra.mxu0 0.0
    %526 = vmatpush.msra.mxu0 0.0
    %527 = vmatpush.msra.mxu0 0.0
    %528 = vmatpush.msra.mxu0 0.0
    %529 = vmatpush.msra.mxu0 0.0
    %530 = vmatpush.msra.mxu0 0.0
    %531 = vmatpush.msra.mxu0 0.0
    %532 = vmatpush.msra.mxu0 %v141
    %533 = vmatpush.msra.mxu0 %v140
    %534 = vmatpush.msra.mxu0 %v139
    %535 = vmatpush.msra.mxu0 %v138
    %536 = vmatmul.f32.gmra.mxu0 %v515
    %v537 = vpop.f32.mrf.mxu0
    %v538 = vadd.f32 %v513, %v537
    %539 = vmatmul.f32.gmra.mxu0 %v518
    %v540 = vpop.f32.mrf.mxu0
    %v541 = vadd.f32 %v513, %v540
    %542 = vdwg.mxu0
    %v543 = vadd.f32 %v538, %v131
    %v544 = vadd.f32 %v541, %v132
    %v545 = vsel %vm75, %v543, 0.0
    %546 = vadd.xlane.f32.xlu0 %v545
    %v547 = vpop.xlane.xlu0 %546
    %v548 = vsel %vm75, %v544, 0.0
    %549 = vadd.xlane.f32.xlu0 %v548
    %v550 = vpop.xlane.xlu0 %549
    %v551 = vmul.f32 %v547, %v88
    %v552 = vmul.f32 %v550, %v88
    %v553 = vsub.f32 %v543, %v551
    %v554 = vsub.f32 %v544, %v552
    %v555 = vmul.f32 %v553, %v553
    %v556 = vmul.f32 %v554, %v554
    %v557 = vsel %vm75, %v555, 0.0
    %558 = vadd.xlane.f32.xlu0 %v557
    %v559 = vpop.xlane.xlu0 %558
    %v560 = vsel %vm75, %v556, 0.0
    %561 = vadd.xlane.f32.xlu0 %v560
    %v562 = vpop.xlane.xlu0 %561
    %v563 = vmul.f32 %v559, %v88
    %v564 = vmul.f32 %v562, %v88
    %v565 = vadd.f32 %v563, 1e-12
    %v566 = vadd.f32 %v564, 1e-12
    %v567 = vrsqrt.pop %v565
    %v568 = vmul.f32 %v567, %v565
    %v569 = vmul.f32 %v568, %v567
    %v570 = vmul.f32 0.5, %v569
    %v571 = vsub.f32 1.5, %v570
    %v572 = vmul.f32 %v567, %v571
    %vm573 = vweird.f32 %v565
    %vm574 = vweird.f32 %v567
    %vm575 = vmor %vm573, %vm574
    %v576 = vsel %vm575, %v567, %v572
    %v577 = vrsqrt.pop %v566
    %v578 = vmul.f32 %v577, %v566
    %v579 = vmul.f32 %v578, %v577
    %v580 = vmul.f32 0.5, %v579
    %v581 = vsub.f32 1.5, %v580
    %v582 = vmul.f32 %v577, %v581
    %vm583 = vweird.f32 %v566
    %vm584 = vweird.f32 %v577
    %vm585 = vmor %vm583, %vm584
    %v586 = vsel %vm585, %v577, %v582
    %v587 = vmul.f32 %v553, %v576
    %v588 = vmul.f32 %v554, %v586
    %v589 = vperm.slane %v143, 0
    %v590 = vmul.f32 %v587, %v589
    %v591 = vmul.f32 %v588, %v589
    %v592 = vperm.slane %v144, 0
    %v593 = vadd.f32 %v590, %v592
    %v594 = vadd.f32 %v591, %v592
    %v595 = vperm.slane %v149, 0
    %v597 = vsel %vm75, %v593, 0
    %v600 = vsel %vm75, %v594, 0
    %602 = vmatpush.msra.mxu0 0.0
    %603 = vmatpush.msra.mxu0 0.0
    %604 = vmatpush.msra.mxu0 0.0
    %605 = vmatpush.msra.mxu0 0.0
    %606 = vmatpush.msra.mxu0 0.0
    %607 = vmatpush.msra.mxu0 0.0
    %608 = vmatpush.msra.mxu0 0.0
    %609 = vmatpush.msra.mxu0 0.0
    %610 = vmatpush.msra.mxu0 0.0
    %611 = vmatpush.msra.mxu0 0.0
    %612 = vmatpush.msra.mxu0 0.0
    %613 = vmatpush.msra.mxu0 0.0
    %614 = vmatpush.msra.mxu0 %v148
    %615 = vmatpush.msra.mxu0 %v147
    %616 = vmatpush.msra.mxu0 %v146
    %617 = vmatpush.msra.mxu0 %v145
    %618 = vmatmul.f32.gmra.mxu0 %v597
    %v619 = vpop.f32.mrf.mxu0
    %v620 = vadd.f32 %v595, %v619
    %621 = vmatmul.f32.gmra.mxu0 %v600
    %v622 = vpop.f32.mrf.mxu0
    %v623 = vadd.f32 %v595, %v622
    %624 = vdwg.mxu0
    %v625 = vmul.f32 %v620, 0.5
    %v626 = vmul.f32 %v623, 0.5
    %v627 = vmul.f32 %v620, 0.044715
    %v628 = vmul.f32 %v623, 0.044715
    %v629 = vmul.f32 %v627, %v620
    %v630 = vmul.f32 %v628, %v623
    %v631 = vmul.f32 %v629, %v620
    %v632 = vmul.f32 %v630, %v623
    %v633 = vadd.f32 %v620, %v631
    %v634 = vadd.f32 %v623, %v632
    %v635 = vmul.f32 %v633, 0.7978846
    %v636 = vmul.f32 %v634, 0.7978846
    %v637 = vtanh.pop %v635
    %v638 = vtanh.pop %v636
    %v639 = vadd.f32 %v637, 1.0
    %v640 = vadd.f32 %v638, 1.0
    %v641 = vmul.f32 %v625, %v639
    %v642 = vmul.f32 %v626, %v640
    %v643 = vperm.slane %v158, 0
    %vm644 = vcmask 523264
    %v646 = vsel %vm644, %v641, 0
    %v649 = vsel %vm644, %v642, 0
    %651 = vmatpush.msra.mxu0 0.0
    %652 = vmatpush.msra.mxu0 0.0
    %653 = vmatpush.msra.mxu0 0.0
    %654 = vmatpush.msra.mxu0 0.0
    %655 = vmatpush.msra.mxu0 0.0
    %656 = vmatpush.msra.mxu0 0.0
    %657 = vmatpush.msra.mxu0 0.0
    %658 = vmatpush.msra.mxu0 0.0
    %659 = vmatpush.msra.mxu0 %v157
    %660 = vmatpush.msra.mxu0 %v156
    %661 = vmatpush.msra.mxu0 %v155
    %662 = vmatpush.msra.mxu0 %v154
    %663 = vmatpush.msra.mxu0 %v153
    %664 = vmatpush.msra.mxu0 %v152
    %665 = vmatpush.msra.mxu0 %v151
    %666 = vmatpush.msra.mxu0 %v150
    %667 = vmatmul.f32.gmra.mxu0 %v646
    %v668 = vpop.f32.mrf.mxu0
    %v669 = vadd.f32 %v643, %v668
    %670 = vmatmul.f32.gmra.mxu0 %v649
    %v671 = vpop.f32.mrf.mxu0
    %v672 = vadd.f32 %v643, %v671
    %673 = vdwg.mxu0
    %v674 = vadd.f32 %v669, %v593
    %v675 = vadd.f32 %v672, %v594
    %v676 = vsel %vm75, %v674, 0.0
    %677 = vadd.xlane.f32.xlu0 %v676
    %v678 = vpop.xlane.xlu0 %677
    %v679 = vsel %vm75, %v675, 0.0
    %680 = vadd.xlane.f32.xlu0 %v679
    %v681 = vpop.xlane.xlu0 %680
    %v682 = vmul.f32 %v678, %v88
    %v683 = vmul.f32 %v681, %v88
    %v684 = vsub.f32 %v674, %v682
    %v685 = vsub.f32 %v675, %v683
    %v686 = vmul.f32 %v684, %v684
    %v687 = vmul.f32 %v685, %v685
    %v688 = vsel %vm75, %v686, 0.0
    %689 = vadd.xlane.f32.xlu0 %v688
    %v690 = vpop.xlane.xlu0 %689
    %v691 = vsel %vm75, %v687, 0.0
    %692 = vadd.xlane.f32.xlu0 %v691
    %v693 = vpop.xlane.xlu0 %692
    %v694 = vmul.f32 %v690, %v88
    %v695 = vmul.f32 %v693, %v88
    %v696 = vadd.f32 %v694, 1e-12
    %v697 = vadd.f32 %v695, 1e-12
    %v698 = vrsqrt.pop %v696
    %v699 = vmul.f32 %v698, %v696
    %v700 = vmul.f32 %v699, %v698
    %v701 = vmul.f32 0.5, %v700
    %v702 = vsub.f32 1.5, %v701
    %v703 = vmul.f32 %v698, %v702
    %vm704 = vweird.f32 %v696
    %vm705 = vweird.f32 %v698
    %vm706 = vmor %vm704, %vm705
    %v707 = vsel %vm706, %v698, %v703
    %v708 = vrsqrt.pop %v697
    %v709 = vmul.f32 %v708, %v697
    %v710 = vmul.f32 %v709, %v708
    %v711 = vmul.f32 0.5, %v710
    %v712 = vsub.f32 1.5, %v711
    %v713 = vmul.f32 %v708, %v712
    %vm714 = vweird.f32 %v697
    %vm715 = vweird.f32 %v708
    %vm716 = vmor %vm714, %vm715
    %v717 = vsel %vm716, %v708, %v713
    %v718 = vmul.f32 %v684, %v707
    %v719 = vmul.f32 %v685, %v717
    %v720 = vperm.slane %v159, 0
    %v721 = vmul.f32 %v718, %v720
    %v722 = vmul.f32 %v719, %v720
    %v723 = vperm.slane %v160, 0
    %v724 = vadd.f32 %v721, %v723
    %v725 = vadd.f32 %v722, %v723
    %s726 = scalar_lea.vmem %s2, 208
    %v727 = vld [vmem:[%s726] sm:$0xff]
    %v728 = vld [vmem:[%s726 + $0x8] sm:$0xff]
    %v729 = vld [vmem:[%s726 + $0x10] sm:$0xff]
    %v730 = vld [vmem:[%s726 + $0x18] sm:$0xff]
    %v731 = vld [vmem:[%s726 + $0x20] sm:$0x1]
    %v732 = vld [vmem:[%s726 + $0x28] sm:$0xff]
    %v733 = vld [vmem:[%s726 + $0x30] sm:$0xff]
    %v734 = vld [vmem:[%s726 + $0x38] sm:$0xff]
    %v735 = vld [vmem:[%s726 + $0x40] sm:$0xff]
    %v736 = vld [vmem:[%s726 + $0x48] sm:$0x1]
    %v737 = vld [vmem:[%s726 + $0x50] sm:$0x1]
    %v738 = vld [vmem:[%s726 + $0x51] sm:$0x1]
    %v739 = vld [vmem:[%s726 + $0x58] sm:$0xff]
    %v740 = vld [vmem:[%s726 + $0x60] sm:$0xff]
    %v741 = vld [vmem:[%s726 + $0x68] sm:$0xff]
    %v742 = vld [vmem:[%s726 + $0x70] sm:$0xff]
    %v743 = vld [vmem:[%s726 + $0x78] sm:$0x1]
    %v744 = vld [vmem:[%s726 + $0x80] sm:$0xff]
    %v745 = vld [vmem:[%s726 + $0x88] sm:$0xff]
    %v746 = vld [vmem:[%s726 + $0x90] sm:$0xff]
    %v747 = vld [vmem:[%s726 + $0x98] sm:$0xff]
    %v748 = vld [vmem:[%s726 + $0xa0] sm:$0xff]
    %v749 = vld [vmem:[%s726 + $0xa8] sm:$0xff]
    %v750 = vld [vmem:[%s726 + $0xb0] sm:$0xff]
    %v751 = vld [vmem:[%s726 + $0xb8] sm:$0xff]
    %v752 = vld [vmem:[%s726 + $0xc0] sm:$0x1]
    %v753 = vld [vmem:[%s726 + $0xc8] sm:$0x1]
    %v754 = vld [vmem:[%s726 + $0xc9] sm:$0x1]
    %v755 = vperm.slane %v731, 0
    %v757 = vsel %vm75, %v724, 0
    %v760 = vsel %vm75, %v725, 0
    %762 = vmatpush.msra.mxu0 0.0
    %763 = vmatpush.msra.mxu0 0.0
    %764 = vmatpush.msra.mxu0 0.0
    %765 = vmatpush.msra.mxu0 0.0
    %766 = vmatpush.msra.mxu0 0.0
    %767 = vmatpush.msra.mxu0 0.0
    %768 = vmatpush.msra.mxu0 0.0
    %769 = vmatpush.msra.mxu0 0.0
    %770 = vmatpush.msra.mxu0 0.0
    %771 = vmatpush.msra.mxu0 0.0
    %772 = vmatpush.msra.mxu0 0.0
    %773 = vmatpush.msra.mxu0 0.0
    %774 = vmatpush.msra.mxu0 %v730
    %775 = vmatpush.msra.mxu0 %v729
    %776 = vmatpush.msra.mxu0 %v728
    %777 = vmatpush.msra.mxu0 %v727
    %778 = vmatmul.f32.gmra.mxu0 %v757
    %v779 = vpop.f32.mrf.mxu0
    %v780 = vadd.f32 %v755, %v779
    %781 = vmatmul.f32.gmra.mxu0 %v760
    %v782 = vpop.f32.mrf.mxu0
    %v783 = vadd.f32 %v755, %v782
    %784 = vdwg.mxu0
    %786 = vrot.lane.b32.xlu0 %v780, 96
    %v787 = vpop.permute.xlu0 %786
    %v788 = vsel %vm194, %v780, 0
    %v790 = vsel %vm194, %v787, 0
    %792 = vmatpush.xpose.msra.mxu0 0.0
    %793 = vmatpush.xpose.msra.mxu0 0.0
    %794 = vmatpush.xpose.msra.mxu0 0.0
    %795 = vmatpush.xpose.msra.mxu0 0.0
    %796 = vmatpush.xpose.msra.mxu0 0.0
    %797 = vmatpush.xpose.msra.mxu0 0.0
    %798 = vmatpush.xpose.msra.mxu0 0.0
    %799 = vmatpush.xpose.msra.mxu0 0.0
    %800 = vmatpush.xpose.msra.mxu0 0.0
    %801 = vmatpush.xpose.msra.mxu0 0.0
    %802 = vmatpush.xpose.msra.mxu0 0.0
    %803 = vmatpush.xpose.msra.mxu0 0.0
    %804 = vmatpush.xpose.msra.mxu0 0.0
    %805 = vmatpush.xpose.msra.mxu0 0.0
    %806 = vmatpush.xpose.msra.mxu0 0.0
    %807 = vmatpush.xpose.msra.mxu0 %v790
    %808 = vmatmul.f32.gmra.mxu0 %v788
    %v809 = vpop.f32.mrf.mxu0
    %v810 = vadd.f32 0.0, %v809
    %811 = vdwg.mxu0
    %v812 = vsel %vm219, %v810, -inf
    %813 = vmax.xlane.f32.xlu0 %v812
    %v814 = vpop.xlane.xlu0 %813
    %v815 = vsub.f32 %v810, %v814
    %v816 = vmul.f32 %v815, 1.442695
    %v817 = vpow.pop %v816
    %v818 = vsel %vm219, %v817, 0.0
    %819 = vadd.xlane.f32.xlu0 %v818
    %v820 = vpop.xlane.xlu0 %819
    %v821 = vrcp.pop %v820
    %v822 = vmul.f32 %v820, %v821
    %v823 = vsub.f32 1.0, %v822
    %v824 = vmul.f32 %v821, %v823
    %v825 = vadd.f32 %v821, %v824
    %vm826 = vweird.f32 %v820
    %vm827 = vweird.f32 %v821
    %vm828 = vmor %vm826, %vm827
    %v829 = vsel %vm828, %v821, %v825
    %v830 = vand.u32 2147483647, %v820
    %vm831 = vcmp.eq.f32.partialorder %v830, 8.507059e+37
    %v832 = vand.u32 %v820, 2147483648
    %v833 = vor.u32 1.1754944e-38, %v832
    %v834 = vsel %vm831, %v833, %v829
    %v835 = vmul.f32 %v817, %v834
    %836 = vrot.lane.b32.xlu0 %v780, 64
    %v837 = vpop.permute.xlu0 %836
    %v840 = vsel %vm219, %v835, 0
    %842 = vmatpush.msra.mxu0 0.0
    %843 = vmatpush.msra.mxu0 0.0
    %844 = vmatpush.msra.mxu0 0.0
    %845 = vmatpush.msra.mxu0 0.0
    %846 = vmatpush.msra.mxu0 0.0
    %847 = vmatpush.msra.mxu0 0.0
    %848 = vmatpush.msra.mxu0 0.0
    %849 = vmatpush.msra.mxu0 0.0
    %850 = vmatpush.msra.mxu0 0.0
    %851 = vmatpush.msra.mxu0 0.0
    %852 = vmatpush.msra.mxu0 0.0
    %853 = vmatpush.msra.mxu0 0.0
    %854 = vmatpush.msra.mxu0 0.0
    %855 = vmatpush.msra.mxu0 0.0
    %856 = vmatpush.msra.mxu0 0.0
    %857 = vmatpush.msra.mxu0 %v837
    %858 = vmatmul.f32.gmra.mxu0 %v840
    %v859 = vpop.f32.mrf.mxu0
    %v860 = vadd.f32 0.0, %v859
    %861 = vdwg.mxu0
    %862 = vrot.lane.b32.xlu0 %v780, 112
    %v863 = vpop.permute.xlu0 %862
    %864 = vrot.lane.b32.xlu0 %v780, 80
    %v865 = vpop.permute.xlu0 %864
    %v866 = vsel %vm194, %v863, 0
    %v868 = vsel %vm194, %v865, 0
    %870 = vmatpush.xpose.msra.mxu0 0.0
    %871 = vmatpush.xpose.msra.mxu0 0.0
    %872 = vmatpush.xpose.msra.mxu0 0.0
    %873 = vmatpush.xpose.msra.mxu0 0.0
    %874 = vmatpush.xpose.msra.mxu0 0.0
    %875 = vmatpush.xpose.msra.mxu0 0.0
    %876 = vmatpush.xpose.msra.mxu0 0.0
    %877 = vmatpush.xpose.msra.mxu0 0.0
    %878 = vmatpush.xpose.msra.mxu0 0.0
    %879 = vmatpush.xpose.msra.mxu0 0.0
    %880 = vmatpush.xpose.msra.mxu0 0.0
    %881 = vmatpush.xpose.msra.mxu0 0.0
    %882 = vmatpush.xpose.msra.mxu0 0.0
    %883 = vmatpush.xpose.msra.mxu0 0.0
    %884 = vmatpush.xpose.msra.mxu0 0.0
    %885 = vmatpush.xpose.msra.mxu0 %v868
    %886 = vmatmul.f32.gmra.mxu0 %v866
    %v887 = vpop.f32.mrf.mxu0
    %v888 = vadd.f32 0.0, %v887
    %889 = vdwg.mxu0
    %v890 = vsel %vm219, %v888, -inf
    %891 = vmax.xlane.f32.xlu0 %v890
    %v892 = vpop.xlane.xlu0 %891
    %v893 = vsub.f32 %v888, %v892
    %v894 = vmul.f32 %v893, 1.442695
    %v895 = vpow.pop %v894
    %v896 = vsel %vm219, %v895, 0.0
    %897 = vadd.xlane.f32.xlu0 %v896
    %v898 = vpop.xlane.xlu0 %897
    %v899 = vrcp.pop %v898
    %v900 = vmul.f32 %v898, %v899
    %v901 = vsub.f32 1.0, %v900
    %v902 = vmul.f32 %v899, %v901
    %v903 = vadd.f32 %v899, %v902
    %vm904 = vweird.f32 %v898
    %vm905 = vweird.f32 %v899
    %vm906 = vmor %vm904, %vm905
    %v907 = vsel %vm906, %v899, %v903
    %v908 = vand.u32 2147483647, %v898
    %vm909 = vcmp.eq.f32.partialorder %v908, 8.507059e+37
    %v910 = vand.u32 %v898, 2147483648
    %v911 = vor.u32 1.1754944e-38, %v910
    %v912 = vsel %vm909, %v911, %v907
    %v913 = vmul.f32 %v895, %v912
    %914 = vrot.lane.b32.xlu0 %v780, 48
    %v915 = vpop.permute.xlu0 %914
    %v918 = vsel %vm219, %v913, 0
    %920 = vmatpush.msra.mxu0 0.0
    %921 = vmatpush.msra.mxu0 0.0
    %922 = vmatpush.msra.mxu0 0.0
    %923 = vmatpush.msra.mxu0 0.0
    %924 = vmatpush.msra.mxu0 0.0
    %925 = vmatpush.msra.mxu0 0.0
    %926 = vmatpush.msra.mxu0 0.0
    %927 = vmatpush.msra.mxu0 0.0
    %928 = vmatpush.msra.mxu0 0.0
    %929 = vmatpush.msra.mxu0 0.0
    %930 = vmatpush.msra.mxu0 0.0
    %931 = vmatpush.msra.mxu0 0.0
    %932 = vmatpush.msra.mxu0 0.0
    %933 = vmatpush.msra.mxu0 0.0
    %934 = vmatpush.msra.mxu0 0.0
    %935 = vmatpush.msra.mxu0 %v915
    %936 = vmatmul.f32.gmra.mxu0 %v918
    %v937 = vpop.f32.mrf.mxu0
    %v938 = vadd.f32 0.0, %v937
    %939 = vdwg.mxu0
    %941 = vrot.lane.b32.xlu0 %v938, 16
    %v942 = vpop.permute.xlu0 %941
    %v944 = vsel %vm194, %v860, %v942
    %946 = vrot.lane.b32.xlu0 %v783, 96
    %v947 = vpop.permute.xlu0 %946
    %v948 = vsel %vm194, %v783, 0
    %v950 = vsel %vm194, %v947, 0
    %952 = vmatpush.xpose.msra.mxu0 0.0
    %953 = vmatpush.xpose.msra.mxu0 0.0
    %954 = vmatpush.xpose.msra.mxu0 0.0
    %955 = vmatpush.xpose.msra.mxu0 0.0
    %956 = vmatpush.xpose.msra.mxu0 0.0
    %957 = vmatpush.xpose.msra.mxu0 0.0
    %958 = vmatpush.xpose.msra.mxu0 0.0
    %959 = vmatpush.xpose.msra.mxu0 0.0
    %960 = vmatpush.xpose.msra.mxu0 0.0
    %961 = vmatpush.xpose.msra.mxu0 0.0
    %962 = vmatpush.xpose.msra.mxu0 0.0
    %963 = vmatpush.xpose.msra.mxu0 0.0
    %964 = vmatpush.xpose.msra.mxu0 0.0
    %965 = vmatpush.xpose.msra.mxu0 0.0
    %966 = vmatpush.xpose.msra.mxu0 0.0
    %967 = vmatpush.xpose.msra.mxu0 %v950
    %968 = vmatmul.f32.gmra.mxu0 %v948
    %v969 = vpop.f32.mrf.mxu0
    %v970 = vadd.f32 0.0, %v969
    %971 = vdwg.mxu0
    %v972 = vsel %vm219, %v970, -inf
    %973 = vmax.xlane.f32.xlu0 %v972
    %v974 = vpop.xlane.xlu0 %973
    %v975 = vsub.f32 %v970, %v974
    %v976 = vmul.f32 %v975, 1.442695
    %v977 = vpow.pop %v976
    %v978 = vsel %vm219, %v977, 0.0
    %979 = vadd.xlane.f32.xlu0 %v978
    %v980 = vpop.xlane.xlu0 %979
    %v981 = vrcp.pop %v980
    %v982 = vmul.f32 %v980, %v981
    %v983 = vsub.f32 1.0, %v982
    %v984 = vmul.f32 %v981, %v983
    %v985 = vadd.f32 %v981, %v984
    %vm986 = vweird.f32 %v980
    %vm987 = vweird.f32 %v981
    %vm988 = vmor %vm986, %vm987
    %v989 = vsel %vm988, %v981, %v985
    %v990 = vand.u32 2147483647, %v980
    %vm991 = vcmp.eq.f32.partialorder %v990, 8.507059e+37
    %v992 = vand.u32 %v980, 2147483648
    %v993 = vor.u32 1.1754944e-38, %v992
    %v994 = vsel %vm991, %v993, %v989
    %v995 = vmul.f32 %v977, %v994
    %996 = vrot.lane.b32.xlu0 %v783, 64
    %v997 = vpop.permute.xlu0 %996
    %v1000 = vsel %vm219, %v995, 0
    %1002 = vmatpush.msra.mxu0 0.0
    %1003 = vmatpush.msra.mxu0 0.0
    %1004 = vmatpush.msra.mxu0 0.0
    %1005 = vmatpush.msra.mxu0 0.0
    %1006 = vmatpush.msra.mxu0 0.0
    %1007 = vmatpush.msra.mxu0 0.0
    %1008 = vmatpush.msra.mxu0 0.0
    %1009 = vmatpush.msra.mxu0 0.0
    %1010 = vmatpush.msra.mxu0 0.0
    %1011 = vmatpush.msra.mxu0 0.0
    %1012 = vmatpush.msra.mxu0 0.0
    %1013 = vmatpush.msra.mxu0 0.0
    %1014 = vmatpush.msra.mxu0 0.0
    %1015 = vmatpush.msra.mxu0 0.0
    %1016 = vmatpush.msra.mxu0 0.0
    %1017 = vmatpush.msra.mxu0 %v997
    %1018 = vmatmul.f32.gmra.mxu0 %v1000
    %v1019 = vpop.f32.mrf.mxu0
    %v1020 = vadd.f32 0.0, %v1019
    %1021 = vdwg.mxu0
    %1022 = vrot.lane.b32.xlu0 %v783, 112
    %v1023 = vpop.permute.xlu0 %1022
    %1024 = vrot.lane.b32.xlu0 %v783, 80
    %v1025 = vpop.permute.xlu0 %1024
    %v1026 = vsel %vm194, %v1023, 0
    %v1028 = vsel %vm194, %v1025, 0
    %1030 = vmatpush.xpose.msra.mxu0 0.0
    %1031 = vmatpush.xpose.msra.mxu0 0.0
    %1032 = vmatpush.xpose.msra.mxu0 0.0
    %1033 = vmatpush.xpose.msra.mxu0 0.0
    %1034 = vmatpush.xpose.msra.mxu0 0.0
    %1035 = vmatpush.xpose.msra.mxu0 0.0
    %1036 = vmatpush.xpose.msra.mxu0 0.0
    %1037 = vmatpush.xpose.msra.mxu0 0.0
    %1038 = vmatpush.xpose.msra.mxu0 0.0
    %1039 = vmatpush.xpose.msra.mxu0 0.0
    %1040 = vmatpush.xpose.msra.mxu0 0.0
    %1041 = vmatpush.xpose.msra.mxu0 0.0
    %1042 = vmatpush.xpose.msra.mxu0 0.0
    %1043 = vmatpush.xpose.msra.mxu0 0.0
    %1044 = vmatpush.xpose.msra.mxu0 0.0
    %1045 = vmatpush.xpose.msra.mxu0 %v1028
    %1046 = vmatmul.f32.gmra.mxu0 %v1026
    %v1047 = vpop.f32.mrf.mxu0
    %v1048 = vadd.f32 0.0, %v1047
    %1049 = vdwg.mxu0
    %v1050 = vsel %vm219, %v1048, -inf
    %1051 = vmax.xlane.f32.xlu0 %v1050
    %v1052 = vpop.xlane.xlu0 %1051
    %v1053 = vsub.f32 %v1048, %v1052
    %v1054 = vmul.f32 %v1053, 1.442695
    %v1055 = vpow.pop %v1054
    %v1056 = vsel %vm219, %v1055, 0.0
    %1057 = vadd.xlane.f32.xlu0 %v1056
    %v1058 = vpop.xlane.xlu0 %1057
    %v1059 = vrcp.pop %v1058
    %v1060 = vmul.f32 %v1058, %v1059
    %v1061 = vsub.f32 1.0, %v1060
    %v1062 = vmul.f32 %v1059, %v1061
    %v1063 = vadd.f32 %v1059, %v1062
    %vm1064 = vweird.f32 %v1058
    %vm1065 = vweird.f32 %v1059
    %vm1066 = vmor %vm1064, %vm1065
    %v1067 = vsel %vm1066, %v1059, %v1063
    %v1068 = vand.u32 2147483647, %v1058
    %vm1069 = vcmp.eq.f32.partialorder %v1068, 8.507059e+37
    %v1070 = vand.u32 %v1058, 2147483648
    %v1071 = vor.u32 1.1754944e-38, %v1070
    %v1072 = vsel %vm1069, %v1071, %v1067
    %v1073 = vmul.f32 %v1055, %v1072
    %1074 = vrot.lane.b32.xlu0 %v783, 48
    %v1075 = vpop.permute.xlu0 %1074
    %v1078 = vsel %vm219, %v1073, 0
    %1080 = vmatpush.msra.mxu0 0.0
    %1081 = vmatpush.msra.mxu0 0.0
    %1082 = vmatpush.msra.mxu0 0.0
    %1083 = vmatpush.msra.mxu0 0.0
    %1084 = vmatpush.msra.mxu0 0.0
    %1085 = vmatpush.msra.mxu0 0.0
    %1086 = vmatpush.msra.mxu0 0.0
    %1087 = vmatpush.msra.mxu0 0.0
    %1088 = vmatpush.msra.mxu0 0.0
    %1089 = vmatpush.msra.mxu0 0.0
    %1090 = vmatpush.msra.mxu0 0.0
    %1091 = vmatpush.msra.mxu0 0.0
    %1092 = vmatpush.msra.mxu0 0.0
    %1093 = vmatpush.msra.mxu0 0.0
    %1094 = vmatpush.msra.mxu0 0.0
    %1095 = vmatpush.msra.mxu0 %v1075
    %1096 = vmatmul.f32.gmra.mxu0 %v1078
    %v1097 = vpop.f32.mrf.mxu0
    %v1098 = vadd.f32 0.0, %v1097
    %1099 = vdwg.mxu0
    %1101 = vrot.lane.b32.xlu0 %v1098, 16
    %v1102 = vpop.permute.xlu0 %1101
    %v1104 = vsel %vm194, %v1020, %v1102
    %v1105 = vperm.slane %v736, 0
    %v1107 = vsel %vm75, %v944, 0
    %v1110 = vsel %vm75, %v1104, 0
    %1112 = vmatpush.msra.mxu0 0.0
    %1113 = vmatpush.msra.mxu0 0.0
    %1114 = vmatpush.msra.mxu0 0.0
    %1115 = vmatpush.msra.mxu0 0.0
    %1116 = vmatpush.msra.mxu0 0.0
    %1117 = vmatpush.msra.mxu0 0.0
    %1118 = vmatpush.msra.mxu0 0.0
    %1119 = vmatpush.msra.mxu0 0.0
    %1120 = vmatpush.msra.mxu0 0.0
    %1121 = vmatpush.msra.mxu0 0.0
    %1122 = vmatpush.msra.mxu0 0.0
    %1123 = vmatpush.msra.mxu0 0.0
    %1124 = vmatpush.msra.mxu0 %v735
    %1125 = vmatpush.msra.mxu0 %v734
    %1126 = vmatpush.msra.mxu0 %v733
    %1127 = vmatpush.msra.mxu0 %v732
    %1128 = vmatmul.f32.gmra.mxu0 %v1107
    %v1129 = vpop.f32.mrf.mxu0
    %v1130 = vadd.f32 %v1105, %v1129
    %1131 = vmatmul.f32.gmra.mxu0 %v1110
    %v1132 = vpop.f32.mrf.mxu0
    %v1133 = vadd.f32 %v1105, %v1132
    %1134 = vdwg.mxu0
    %v1135 = vadd.f32 %v1130, %v724
    %v1136 = vadd.f32 %v1133, %v725
    %v1137 = vsel %vm75, %v1135, 0.0
    %1138 = vadd.xlane.f32.xlu0 %v1137
    %v1139 = vpop.xlane.xlu0 %1138
    %v1140 = vsel %vm75, %v1136, 0.0
    %1141 = vadd.xlane.f32.xlu0 %v1140
    %v1142 = vpop.xlane.xlu0 %1141
    %v1143 = vmul.f32 %v1139, %v88
    %v1144 = vmul.f32 %v1142, %v88
    %v1145 = vsub.f32 %v1135, %v1143
    %v1146 = vsub.f32 %v1136, %v1144
    %v1147 = vmul.f32 %v1145, %v1145
    %v1148 = vmul.f32 %v1146, %v1146
    %v1149 = vsel %vm75, %v1147, 0.0
    %1150 = vadd.xlane.f32.xlu0 %v1149
    %v1151 = vpop.xlane.xlu0 %1150
    %v1152 = vsel %vm75, %v1148, 0.0
    %1153 = vadd.xlane.f32.xlu0 %v1152
    %v1154 = vpop.xlane.xlu0 %1153
    %v1155 = vmul.f32 %v1151, %v88
    %v1156 = vmul.f32 %v1154, %v88
    %v1157 = vadd.f32 %v1155, 1e-12
    %v1158 = vadd.f32 %v1156, 1e-12
    %v1159 = vrsqrt.pop %v1157
    %v1160 = vmul.f32 %v1159, %v1157
    %v1161 = vmul.f32 %v1160, %v1159
    %v1162 = vmul.f32 0.5, %v1161
    %v1163 = vsub.f32 1.5, %v1162
    %v1164 = vmul.f32 %v1159, %v1163
    %vm1165 = vweird.f32 %v1157
    %vm1166 = vweird.f32 %v1159
    %vm1167 = vmor %vm1165, %vm1166
    %v1168 = vsel %vm1167, %v1159, %v1164
    %v1169 = vrsqrt.pop %v1158
    %v1170 = vmul.f32 %v1169, %v1158
    %v1171 = vmul.f32 %v1170, %v1169
    %v1172 = vmul.f32 0.5, %v1171
    %v1173 = vsub.f32 1.5, %v1172
    %v1174 = vmul.f32 %v1169, %v1173
    %vm1175 = vweird.f32 %v1158
    %vm1176 = vweird.f32 %v1169
    %vm1177 = vmor %vm1175, %vm1176
    %v1178 = vsel %vm1177, %v1169, %v1174
    %v1179 = vmul.f32 %v1145, %v1168
    %v1180 = vmul.f32 %v1146, %v1178
    %v1181 = vperm.slane %v737, 0
    %v1182 = vmul.f32 %v1179, %v1181
    %v1183 = vmul.f32 %v1180, %v1181
    %v1184 = vperm.slane %v738, 0
    %v1185 = vadd.f32 %v1182, %v1184
    %v1186 = vadd.f32 %v1183, %v1184
    %v1187 = vperm.slane %v743, 0
    %v1189 = vsel %vm75, %v1185, 0
    %v1192 = vsel %vm75, %v1186, 0
    %1194 = vmatpush.msra.mxu0 0.0
    %1195 = vmatpush.msra.mxu0 0.0
    %1196 = vmatpush.msra.mxu0 0.0
    %1197 = vmatpush.msra.mxu0 0.0
    %1198 = vmatpush.msra.mxu0 0.0
    %1199 = vmatpush.msra.mxu0 0.0
    %1200 = vmatpush.msra.mxu0 0.0
    %1201 = vmatpush.msra.mxu0 0.0
    %1202 = vmatpush.msra.mxu0 0.0
    %1203 = vmatpush.msra.mxu0 0.0
    %1204 = vmatpush.msra.mxu0 0.0
    %1205 = vmatpush.msra.mxu0 0.0
    %1206 = vmatpush.msra.mxu0 %v742
    %1207 = vmatpush.msra.mxu0 %v741
    %1208 = vmatpush.msra.mxu0 %v740
    %1209 = vmatpush.msra.mxu0 %v739
    %1210 = vmatmul.f32.gmra.mxu0 %v1189
    %v1211 = vpop.f32.mrf.mxu0
    %v1212 = vadd.f32 %v1187, %v1211
    %1213 = vmatmul.f32.gmra.mxu0 %v1192
    %v1214 = vpop.f32.mrf.mxu0
    %v1215 = vadd.f32 %v1187, %v1214
    %1216 = vdwg.mxu0
    %v1217 = vmul.f32 %v1212, 0.5
    %v1218 = vmul.f32 %v1215, 0.5
    %v1219 = vmul.f32 %v1212, 0.044715
    %v1220 = vmul.f32 %v1215, 0.044715
    %v1221 = vmul.f32 %v1219, %v1212
    %v1222 = vmul.f32 %v1220, %v1215
    %v1223 = vmul.f32 %v1221, %v1212
    %v1224 = vmul.f32 %v1222, %v1215
    %v1225 = vadd.f32 %v1212, %v1223
    %v1226 = vadd.f32 %v1215, %v1224
    %v1227 = vmul.f32 %v1225, 0.7978846
    %v1228 = vmul.f32 %v1226, 0.7978846
    %v1229 = vtanh.pop %v1227
    %v1230 = vtanh.pop %v1228
    %v1231 = vadd.f32 %v1229, 1.0
    %v1232 = vadd.f32 %v1230, 1.0
    %v1233 = vmul.f32 %v1217, %v1231
    %v1234 = vmul.f32 %v1218, %v1232
    %v1235 = vperm.slane %v752, 0
    %v1237 = vsel %vm644, %v1233, 0
    %v1240 = vsel %vm644, %v1234, 0
    %1242 = vmatpush.msra.mxu0 0.0
    %1243 = vmatpush.msra.mxu0 0.0
    %1244 = vmatpush.msra.mxu0 0.0
    %1245 = vmatpush.msra.mxu0 0.0
    %1246 = vmatpush.msra.mxu0 0.0
    %1247 = vmatpush.msra.mxu0 0.0
    %1248 = vmatpush.msra.mxu0 0.0
    %1249 = vmatpush.msra.mxu0 0.0
    %1250 = vmatpush.msra.mxu0 %v751
    %1251 = vmatpush.msra.mxu0 %v750
    %1252 = vmatpush.msra.mxu0 %v749
    %1253 = vmatpush.msra.mxu0 %v748
    %1254 = vmatpush.msra.mxu0 %v747
    %1255 = vmatpush.msra.mxu0 %v746
    %1256 = vmatpush.msra.mxu0 %v745
    %1257 = vmatpush.msra.mxu0 %v744
    %1258 = vmatmul.f32.gmra.mxu0 %v1237
    %v1259 = vpop.f32.mrf.mxu0
    %v1260 = vadd.f32 %v1235, %v1259
    %1261 = vmatmul.f32.gmra.mxu0 %v1240
    %v1262 = vpop.f32.mrf.mxu0
    %v1263 = vadd.f32 %v1235, %v1262
    %1264 = vdwg.mxu0
    %v1265 = vadd.f32 %v1260, %v1185
    %v1266 = vadd.f32 %v1263, %v1186
    %v1267 = vsel %vm75, %v1265, 0.0
    %1268 = vadd.xlane.f32.xlu0 %v1267
    %v1269 = vpop.xlane.xlu0 %1268
    %v1270 = vsel %vm75, %v1266, 0.0
    %1271 = vadd.xlane.f32.xlu0 %v1270
    %v1272 = vpop.xlane.xlu0 %1271
    %v1273 = vmul.f32 %v1269, %v88
    %v1274 = vmul.f32 %v1272, %v88
    %v1275 = vsub.f32 %v1265, %v1273
    %v1276 = vsub.f32 %v1266, %v1274
    %v1277 = vmul.f32 %v1275, %v1275
    %v1278 = vmul.f32 %v1276, %v1276
    %v1279 = vsel %vm75, %v1277, 0.0
    %1280 = vadd.xlane.f32.xlu0 %v1279
    %v1281 = vpop.xlane.xlu0 %1280
    %v1282 = vsel %vm75, %v1278, 0.0
    %1283 = vadd.xlane.f32.xlu0 %v1282
    %v1284 = vpop.xlane.xlu0 %1283
    %v1285 = vmul.f32 %v1281, %v88
    %v1286 = vmul.f32 %v1284, %v88
    %v1287 = vadd.f32 %v1285, 1e-12
    %v1288 = vadd.f32 %v1286, 1e-12
    %v1289 = vrsqrt.pop %v1287
    %v1290 = vmul.f32 %v1289, %v1287
    %v1291 = vmul.f32 %v1290, %v1289
    %v1292 = vmul.f32 0.5, %v1291
    %v1293 = vsub.f32 1.5, %v1292
    %v1294 = vmul.f32 %v1289, %v1293
    %vm1295 = vweird.f32 %v1287
    %vm1296 = vweird.f32 %v1289
    %vm1297 = vmor %vm1295, %vm1296
    %v1298 = vsel %vm1297, %v1289, %v1294
    %v1299 = vrsqrt.pop %v1288
    %v1300 = vmul.f32 %v1299, %v1288
    %v1301 = vmul.f32 %v1300, %v1299
    %v1302 = vmul.f32 0.5, %v1301
    %v1303 = vsub.f32 1.5, %v1302
    %v1304 = vmul.f32 %v1299, %v1303
    %vm1305 = vweird.f32 %v1288
    %vm1306 = vweird.f32 %v1299
    %vm1307 = vmor %vm1305, %vm1306
    %v1308 = vsel %vm1307, %v1299, %v1304
    %v1309 = vmul.f32 %v1275, %v1298
    %v1310 = vmul.f32 %v1276, %v1308
    %v1311 = vperm.slane %v753, 0
    %v1312 = vmul.f32 %v1309, %v1311
    %v1313 = vmul.f32 %v1310, %v1311
    %v1314 = vperm.slane %v754, 0
    %v1315 = vadd.f32 %v1312, %v1314
    %v1316 = vadd.f32 %v1313, %v1314
    %v1317 = vld [vmem:[%s1 + $0x90] sm:$0xff]
    %v1318 = vld [vmem:[%s1 + $0x98] sm:$0xff]
    %v1319 = vld [vmem:[%s1 + $0xa0] sm:$0xff]
    %v1320 = vld [vmem:[%s1 + $0xa8] sm:$0xff]
    %v1321 = vld [vmem:[%s1 + $0xb0] sm:$0x1]
    %v1322 = vperm.slane %v1321, 0
    %v1324 = vsel %vm75, %v1315, 0
    %v1327 = vsel %vm75, %v1316, 0
    %1329 = vmatpush.msra.mxu0 0.0
    %1330 = vmatpush.msra.mxu0 0.0
    %1331 = vmatpush.msra.mxu0 0.0
    %1332 = vmatpush.msra.mxu0 0.0
    %1333 = vmatpush.msra.mxu0 0.0
    %1334 = vmatpush.msra.mxu0 0.0
    %1335 = vmatpush.msra.mxu0 0.0
    %1336 = vmatpush.msra.mxu0 0.0
    %1337 = vmatpush.msra.mxu0 0.0
    %1338 = vmatpush.msra.mxu0 0.0
    %1339 = vmatpush.msra.mxu0 0.0
    %1340 = vmatpush.msra.mxu0 0.0
    %1341 = vmatpush.msra.mxu0 %v1320
    %1342 = vmatpush.msra.mxu0 %v1319
    %1343 = vmatpush.msra.mxu0 %v1318
    %1344 = vmatpush.msra.mxu0 %v1317
    %1345 = vmatmul.f32.gmra.mxu0 %v1324
    %v1346 = vpop.f32.mrf.mxu0
    %v1347 = vadd.f32 %v1322, %v1346
    %1348 = vmatmul.f32.gmra.mxu0 %v1327
    %v1349 = vpop.f32.mrf.mxu0
    %v1350 = vadd.f32 %v1322, %v1349
    %1351 = vdwg.mxu0
    %v1352 = vmul.f32 %v1347, 0.5
    %v1353 = vmul.f32 %v1350, 0.5
    %v1354 = vmul.f32 %v1347, 0.044715
    %v1355 = vmul.f32 %v1350, 0.044715
    %v1356 = vmul.f32 %v1354, %v1347
    %v1357 = vmul.f32 %v1355, %v1350
    %v1358 = vmul.f32 %v1356, %v1347
    %v1359 = vmul.f32 %v1357, %v1350
    %v1360 = vadd.f32 %v1347, %v1358
    %v1361 = vadd.f32 %v1350, %v1359
    %v1362 = vmul.f32 %v1360, 0.7978846
    %v1363 = vmul.f32 %v1361, 0.7978846
    %v1364 = vtanh.pop %v1362
    %v1365 = vtanh.pop %v1363
    %v1366 = vadd.f32 %v1364, 1.0
    %v1367 = vadd.f32 %v1365, 1.0
    %v1368 = vmul.f32 %v1352, %v1366
    %v1369 = vmul.f32 %v1353, %v1367
    %v1370 = vld [vmem:[%s1 + $0xb8] sm:$0x1]
    %v1371 = vld [vmem:[%s1 + $0xb9] sm:$0x1]
    %v1372 = vsel %vm75, %v1368, 0.0
    %1373 = vadd.xlane.f32.xlu0 %v1372
    %v1374 = vpop.xlane.xlu0 %1373
    %v1375 = vsel %vm75, %v1369, 0.0
    %1376 = vadd.xlane.f32.xlu0 %v1375
    %v1377 = vpop.xlane.xlu0 %1376
    %v1378 = vmul.f32 %v1374, %v88
    %v1379 = vmul.f32 %v1377, %v88
    %v1380 = vsub.f32 %v1368, %v1378
    %v1381 = vsub.f32 %v1369, %v1379
    %v1382 = vmul.f32 %v1380, %v1380
    %v1383 = vmul.f32 %v1381, %v1381
    %v1384 = vsel %vm75, %v1382, 0.0
    %1385 = vadd.xlane.f32.xlu0 %v1384
    %v1386 = vpop.xlane.xlu0 %1385
    %v1387 = vsel %vm75, %v1383, 0.0
    %1388 = vadd.xlane.f32.xlu0 %v1387
    %v1389 = vpop.xlane.xlu0 %1388
    %v1390 = vmul.f32 %v1386, %v88
    %v1391 = vmul.f32 %v1389, %v88
    %v1392 = vadd.f32 %v1390, 1e-12
    %v1393 = vadd.f32 %v1391, 1e-12
    %v1394 = vrsqrt.pop %v1392
    %v1395 = vmul.f32 %v1394, %v1392
    %v1396 = vmul.f32 %v1395, %v1394
    %v1397 = vmul.f32 0.5, %v1396
    %v1398 = vsub.f32 1.5, %v1397
    %v1399 = vmul.f32 %v1394, %v1398
    %vm1400 = vweird.f32 %v1392
    %vm1401 = vweird.f32 %v1394
    %vm1402 = vmor %vm1400, %vm1401
    %v1403 = vsel %vm1402, %v1394, %v1399
    %v1404 = vrsqrt.pop %v1393
    %v1405 = vmul.f32 %v1404, %v1393
    %v1406 = vmul.f32 %v1405, %v1404
    %v1407 = vmul.f32 0.5, %v1406
    %v1408 = vsub.f32 1.5, %v1407
    %v1409 = vmul.f32 %v1404, %v1408
    %vm1410 = vweird.f32 %v1393
    %vm1411 = vweird.f32 %v1404
    %vm1412 = vmor %vm1410, %vm1411
    %v1413 = vsel %vm1412, %v1404, %v1409
    %v1414 = vmul.f32 %v1380, %v1403
    %v1415 = vmul.f32 %v1381, %v1413
    %v1416 = vperm.slane %v1370, 0
    %v1417 = vmul.f32 %v1414, %v1416
    %v1418 = vmul.f32 %v1415, %v1416
    %v1419 = vperm.slane %v1371, 0
    %v1420 = vadd.f32 %v1417, %v1419
    %v1421 = vadd.f32 %v1418, %v1419
    %v1422 = vld [vmem:[%s1 + $0xc0] sm:$0xff]
    %v1423 = vld [vmem:[%s1 + $0xc8] sm:$0xff]
    %v1424 = vld [vmem:[%s1 + $0xd0] sm:$0xff]
    %v1425 = vld [vmem:[%s1 + $0xd8] sm:$0xff]
    %v1426 = vld [vmem:[%s1 + $0xe0] sm:$0x1]
    %v1427 = vperm.slane %v1426, 0
    %v1429 = vsel %vm75, %v1420, 0
    %v1432 = vsel %vm75, %v1421, 0
    %1434 = vmatpush.msra.mxu0 0.0
    %1435 = vmatpush.msra.mxu0 0.0
    %1436 = vmatpush.msra.mxu0 0.0
    %1437 = vmatpush.msra.mxu0 0.0
    %1438 = vmatpush.msra.mxu0 0.0
    %1439 = vmatpush.msra.mxu0 0.0
    %1440 = vmatpush.msra.mxu0 0.0
    %1441 = vmatpush.msra.mxu0 0.0
    %1442 = vmatpush.msra.mxu0 0.0
    %1443 = vmatpush.msra.mxu0 0.0
    %1444 = vmatpush.msra.mxu0 0.0
    %1445 = vmatpush.msra.mxu0 0.0
    %1446 = vmatpush.msra.mxu0 %v1425
    %1447 = vmatpush.msra.mxu0 %v1424
    %1448 = vmatpush.msra.mxu0 %v1423
    %1449 = vmatpush.msra.mxu0 %v1422
    %1450 = vmatmul.f32.gmra.mxu0 %v1429
    %v1451 = vpop.f32.mrf.mxu0
    %v1452 = vadd.f32 %v1427, %v1451
    %1453 = vmatmul.f32.gmra.mxu0 %v1432
    %v1454 = vpop.f32.mrf.mxu0
    %v1455 = vadd.f32 %v1427, %v1454
    %1456 = vdwg.mxu0
    %1457 = vmax.xlane.f32.xlu0 %v1452
    %v1458 = vpop.xlane.xlu0 %1457
    %1459 = vmax.xlane.f32.xlu0 %v1455
    %v1460 = vpop.xlane.xlu0 %1459
    %v1461 = vsub.f32 %v1452, %v1458
    %v1462 = vsub.f32 %v1455, %v1460
    %v1463 = vmul.f32 %v1461, 1.442695
    %v1464 = vpow.pop %v1463
    %v1465 = vmul.f32 %v1462, 1.442695
    %v1466 = vpow.pop %v1465
    %1467 = vadd.xlane.f32.xlu0 %v1464
    %v1468 = vpop.xlane.xlu0 %1467
    %1469 = vadd.xlane.f32.xlu0 %v1466
    %v1470 = vpop.xlane.xlu0 %1469
    %v1471 = vrcp.pop %v1468
    %v1472 = vmul.f32 %v1468, %v1471
    %v1473 = vsub.f32 1.0, %v1472
    %v1474 = vmul.f32 %v1471, %v1473
    %v1475 = vadd.f32 %v1471, %v1474
    %vm1476 = vweird.f32 %v1468
    %vm1477 = vweird.f32 %v1471
    %vm1478 = vmor %vm1476, %vm1477
    %v1479 = vsel %vm1478, %v1471, %v1475
    %v1480 = vand.u32 2147483647, %v1468
    %vm1481 = vcmp.eq.f32.partialorder %v1480, 8.507059e+37
    %v1482 = vand.u32 %v1468, 2147483648
    %v1483 = vor.u32 1.1754944e-38, %v1482
    %v1484 = vsel %vm1481, %v1483, %v1479
    %v1485 = vmul.f32 %v1464, %v1484
    %v1486 = vrcp.pop %v1470
    %v1487 = vmul.f32 %v1470, %v1486
    %v1488 = vsub.f32 1.0, %v1487
    %v1489 = vmul.f32 %v1486, %v1488
    %v1490 = vadd.f32 %v1486, %v1489
    %vm1491 = vweird.f32 %v1470
    %vm1492 = vweird.f32 %v1486
    %vm1493 = vmor %vm1491, %vm1492
    %v1494 = vsel %vm1493, %v1486, %v1490
    %v1495 = vand.u32 2147483647, %v1470
    %vm1496 = vcmp.eq.f32.partialorder %v1495, 8.507059e+37
    %v1497 = vand.u32 %v1470, 2147483648
    %v1498 = vor.u32 1.1754944e-38, %v1497
    %v1499 = vsel %vm1496, %v1498, %v1494
    %v1500 = vmul.f32 %v1466, %v1499
    %1501 = vst [vmem:[#allocation2] sm:$0xff] %v1485
    %1502 = vst [vmem:[#allocation2 + $0x8] sm:$0xff] %v1500
    %vm1503 = vcmp.eq.f32.partialorder %v1452, %v1458
    %vm1504 = vcmp.eq.f32.partialorder %v1455, %v1460
    %v1505 = vsel %vm1503, %v20, 2147483647
    %v1506 = vsel %vm1504, %v20, 2147483647
    %v1507 = vand.u32 %v1505, 65535
    %v1508 = vshra.s32 %v1505, 16
    %v1509 = vcvt.s32.f32 %v1507
    %v1510 = vcvt.s32.f32 %v1508
    %1511 = vmin.xlane.f32.xlu0 %v1510
    %v1512 = vpop.xlane.xlu0 %1511
    %vm1513 = vcmp.eq.f32.partialorder %v1510, %v1512
    %v1514 = vsel %vm1513, %v1509, inf
    %1515 = vmin.xlane.f32.xlu0 %v1514
    %v1516 = vpop.xlane.xlu0 %1515
    %v1517 = vcvt.f32.s32 %v1516
    %v1518 = vcvt.f32.s32 %v1512
    %v1519 = vshll.u32 %v1518, 16
    %v1520 = vadd.s32 %v1519, %v1517
    %v1521 = vand.u32 %v1506, 65535
    %v1522 = vshra.s32 %v1506, 16
    %v1523 = vcvt.s32.f32 %v1521
    %v1524 = vcvt.s32.f32 %v1522
    %1525 = vmin.xlane.f32.xlu0 %v1524
    %v1526 = vpop.xlane.xlu0 %1525
    %vm1527 = vcmp.eq.f32.partialorder %v1524, %v1526
    %v1528 = vsel %vm1527, %v1523, inf
    %1529 = vmin.xlane.f32.xlu0 %v1528
    %v1530 = vpop.xlane.xlu0 %1529
    %v1531 = vcvt.f32.s32 %v1530
    %v1532 = vcvt.f32.s32 %v1526
    %v1533 = vshll.u32 %v1532, 16
    %v1534 = vadd.s32 %v1533, %v1531
    %vm1535 = vcmask 7168
    %1536 = vst.msk [vmem:[%s4] sm:$0xff] %vm1535, %v1520
    %1537 = vst.msk [vmem:[%s4 + $0x8] sm:$0xff] %vm1535, %v1534
    // Predicated region
    $region14: #{mlm_cls_forward.1} parent=1 // pred_check
      _
    $region15: #{mlm_cls_forward.1} parent=1 // pred_check_branch
      %1539 = sbr.rel (0) target = $region17
    $region16: #{mlm_cls_forward.1} parent=1 // pred_region
      %1541 = vsyncadd [#allocation3], 0
      %s1542 = sshll.u32 [#allocation2], 4
      %s1543 = int_to_ptr.vmem [resolvable:$true] %s1542
      %s1544 = sshll.u32 %s3, 4
      %s1545 = int_to_ptr.hbm [resolvable:$true] %s1544
      %1550 = dma.vmem_to_hbm [thread:$0]  %s1543, 256, %s1545, [#allocation3], 128, 128, 8
    $region17: #{mlm_cls_forward.1} parent=1 // pred_fallthru
      _
    // Predicated region
    $region18: #{mlm_cls_forward.1} parent=1 // pred_check
      _
    $region19: #{mlm_cls_forward.1} parent=1 // pred_check_branch
      %1552 = sbr.rel (0) target = $region21
    $region20: #{mlm_cls_forward.1} parent=1 // pred_region
      _
    $region21: #{mlm_cls_forward.1} parent=1 // pred_fallthru
      _
    // Predicated region
    $region22: #{mlm_cls_forward.1} parent=1 // pred_check
      _
    $region23: #{mlm_cls_forward.1} parent=1 // pred_check_branch
      %1554 = sbr.rel (0) target = $region25
    $region24: #{mlm_cls_forward.1} parent=1 // pred_region
      %1556 = dma.done [#allocation3], 256
    $region25: #{mlm_cls_forward.1} parent=1 // pred_fallthru
      _
    // Predicated region
    $region26: #{mlm_cls_forward.1} parent=1 // pred_check
      _
    $region27: #{mlm_cls_forward.1} parent=1 // pred_check_branch
      %1558 = sbr.rel (0) target = $region29
    $region28: #{mlm_cls_forward.1} parent=1 // pred_region
      _
    $region29: #{mlm_cls_forward.1} parent=1 // pred_fallthru
      _
    %1559 = vsyncpa [#allocation3], 1

</llo_original>
